<compile_context>
chip_gen: v7x
topology: tpu7x:2x2x1
jax: 0.10.0
libtpu: 0.0.40
codegen_flags: <defaults>
</compile_context>

<pallas_src>
import jax
import jax.numpy as jnp
from jax.experimental import pallas as pl
from jax.experimental.pallas import tpu as pltpu

DW_K = 5      # depthwise kernel size
DW_PAD = 2    # depthwise "same" padding
SUBLANES = 8


def _round_up(n, m):
    return ((n + m - 1) // m) * m


def _conv_block_kernel(x_ref, dwp_ref, wf_ref, bf_ref, o_ref, rhs_ref):
    # x_ref  : (C_in, T)          f32   raw input for one batch (no padding)
    # dwp_ref: (C_in, 8)          f32   cols [0:5] depthwise taps, col 5 bias
    # wf_ref : (C_out, 2*c_pad)   bf16  fused [W_pw | W_proj] (zero pad columns)
    # bf_ref : (C_out, 1)         f32   pw_bias + proj_bias
    # o_ref  : (C_out, T)         f32
    # rhs_ref: (2*c_pad, T)       f32   VMEM scratch: stacked [y ; x]
    c_in, t = x_ref.shape
    c_pad = rhs_ref.shape[0] // 2

    x = x_ref[...]                                            # (C_in, T) f32

    # ---- depthwise conv (k=5, zero "same" padding), f32 on the VPU ----
    # tap offset d = k - 2 : contribution w[:, k] * x[:, t + d], zero outside.
    # Shifts are done with pltpu.roll (XLU slot, co-issues with VPU/MXU work)
    # and masked with an iota compare; no padded slab is ever materialized.
    col = jax.lax.broadcasted_iota(jnp.int32, (c_in, t), 1)
    acc = dwp_ref[:, DW_PAD:DW_PAD + 1] * x                   # center tap, d = 0
    for k in range(DW_K):
        d = k - DW_PAD
        if d == 0:
            continue
        rolled = pltpu.roll(x, shift=(-d) % t, axis=1)        # rolled[:,t] = x[:,t+d]
        valid = jnp.logical_and(col + d >= 0, col + d < t)
        acc = acc + dwp_ref[:, k:k + 1] * jnp.where(valid, rolled, 0.0)
    y = jnp.maximum(acc + dwp_ref[:, DW_K:DW_K + 1], 0.0)     # + bias, ReLU

    # ---- stack [y ; x] into a sublane-aligned f32 scratch (fused-dot RHS) ----
    # Zero the (<8 row) channel-pad bands first (aligned 8-row stores), then
    # overwrite with data; padded rows stay finite/zero and their Wf columns are 0.
    zpad = jnp.zeros((SUBLANES, t), jnp.float32)
    rhs_ref[c_pad - SUBLANES:c_pad, :] = zpad
    rhs_ref[2 * c_pad - SUBLANES:, :] = zpad
    rhs_ref[0:c_in, :] = y
    rhs_ref[c_pad:c_pad + c_in, :] = x

    # ---- fused 1x1 convs: ONE MXU dot, bf16 operands, f32 accumulation ----
    rhs = rhs_ref[...].astype(jnp.bfloat16)                   # (2*c_pad, T)
    out = jnp.dot(wf_ref[...], rhs, preferred_element_type=jnp.float32)
    o_ref[...] = jnp.maximum(out + bf_ref[...], 0.0).astype(o_ref.dtype)


def conv_block(x, dw_w, dw_b, pw_w, pw_b, proj_w, proj_b):
    """ConvBlock forward.

    x:      (B, C_in, T)  NCW
    dw_w:   (C_in, 1, 5)      dw_b:   (C_in,)
    pw_w:   (C_out, C_in, 1)  pw_b:   (C_out,)
    proj_w: (C_out, C_in, 1)  proj_b: (C_out,)
    """
    f32 = jnp.float32
    B, C_in, T = x.shape
    C_out = pw_w.shape[0]
    c_pad = _round_up(C_in, SUBLANES)

    x = x.astype(f32)   # no padding / no copy of the activation tensor

    # Packed depthwise params: (C_in, 8) -> cols [0:5] taps, col 5 bias.
    dwp = jnp.zeros((C_in, SUBLANES), f32)
    dwp = dwp.at[:, :DW_K].set(dw_w.reshape(C_in, DW_K).astype(f32))
    dwp = dwp.at[:, DW_K].set(dw_b.astype(f32))

    # Fused 1x1 weight [W_pw | W_proj] over a 2*c_pad contraction (bf16 operand),
    # padded channel columns carry zero weights.  Biases pre-summed.
    wf = jnp.zeros((C_out, 2 * c_pad), f32)
    wf = wf.at[:, :C_in].set(pw_w.reshape(C_out, C_in).astype(f32))
    wf = wf.at[:, c_pad:c_pad + C_in].set(proj_w.reshape(C_out, C_in).astype(f32))
    wf = wf.astype(jnp.bfloat16)
    bf = (pw_b + proj_b).reshape(C_out, 1).astype(f32)

    grid_spec = pltpu.PrefetchScalarGridSpec(
        num_scalar_prefetch=0,
        grid=(B,),
        in_specs=[
            pl.BlockSpec((None, C_in, T), lambda b: (b, 0, 0)),        # x (raw)
            pl.BlockSpec((C_in, SUBLANES), lambda b: (0, 0)),          # dw taps+bias
            pl.BlockSpec((C_out, 2 * c_pad), lambda b: (0, 0)),        # fused 1x1 W
            pl.BlockSpec((C_out, 1), lambda b: (0, 0)),                # fused bias
        ],
        out_specs=pl.BlockSpec((None, C_out, T), lambda b: (b, 0, 0)),
        scratch_shapes=[pltpu.VMEM((2 * c_pad, T), f32)],
    )

    flops = 2 * B * T * (DW_K * C_in + 2 * C_out * c_pad)
    bytes_accessed = (B * C_in * T * 4 + dwp.size * 4 + wf.size * 2 + bf.size * 4
                      + B * C_out * T * 4)
    cost = pl.CostEstimate(flops=flops, transcendentals=0,
                           bytes_accessed=bytes_accessed)

    out = pl.pallas_call(
        _conv_block_kernel,
        out_shape=jax.ShapeDtypeStruct((B, C_out, T), f32),
        grid_spec=grid_spec,
        compiler_params=pltpu.CompilerParams(
            dimension_semantics=("parallel",),        # batch across TCs / megacore
            vmem_limit_bytes=32 * 1024 * 1024,        # v7x-safe (64 MiB physical)
        ),
        cost_estimate=cost,
    )(x, dwp, wf, bf)
    return out
    # TODO(synk): for very long T add a second "parallel" time-tile grid axis
    # (tile ~2048 lanes, 2-column halo handled by the same roll+mask) to bound
    # per-block VMEM on v7x and feed both TensorCores when B is 1.


def _reference(x, dw_w, dw_b, pw_w, pw_b, proj_w, proj_b):
    """Pure-JAX f32 reference matching torch ConvBlock.forward."""
    B, C, T = x.shape
    xp = jnp.pad(x, ((0, 0), (0, 0), (DW_PAD, DW_PAD)))
    w = dw_w.reshape(C, DW_K)
    dw = sum(w[None, :, k:k + 1] * xp[:, :, k:k + T] for k in range(DW_K))
    y = jnp.maximum(dw + dw_b[None, :, None], 0.0)
    hp = jnp.einsum('oc,bct->bot', pw_w.reshape(-1, C), y,
                    precision=jax.lax.Precision.HIGHEST) + pw_b[None, :, None]
    rp = jnp.einsum('oc,bct->bot', proj_w.reshape(-1, C), x,
                    precision=jax.lax.Precision.HIGHEST) + proj_b[None, :, None]
    return jnp.maximum(hp + rp, 0.0)


if __name__ == "__main__":
    key = jax.random.PRNGKey(0)
    B, C_in, C_out, T = 2, 129, 16, 16   # module defaults: 129 -> 16 channels
    ks = jax.random.split(key, 7)

    x = jax.random.normal(ks[0], (B, C_in, T), dtype=jnp.float32)
    # Torch-style uniform init scales (~1/sqrt(fan_in)).
    dw_w = jax.random.uniform(ks[1], (C_in, 1, DW_K), jnp.float32, -0.4, 0.4)
    dw_b = jax.random.uniform(ks[2], (C_in,), jnp.float32, -0.4, 0.4)
    pw_w = jax.random.uniform(ks[3], (C_out, C_in, 1), jnp.float32, -0.09, 0.09)
    pw_b = jax.random.uniform(ks[4], (C_out,), jnp.float32, -0.09, 0.09)
    proj_w = jax.random.uniform(ks[5], (C_out, C_in, 1), jnp.float32, -0.09, 0.09)
    proj_b = jax.random.uniform(ks[6], (C_out,), jnp.float32, -0.09, 0.09)

    out = jax.block_until_ready(
        conv_block(x, dw_w, dw_b, pw_w, pw_b, proj_w, proj_b))
    ref = _reference(x, dw_w, dw_b, pw_w, pw_b, proj_w, proj_b)

    assert out.shape == ref.shape == (B, C_out, T)
    # bf16 MXU operands (f32 accumulation) give ~1e-3..1e-2 absolute deviation vs
    # the f32 reference; structural bugs (wrong tap/shift/channel mapping) produce
    # errors well above 1e-1.
    max_err = float(jnp.max(jnp.abs(out - ref)))
    assert max_err < 3e-2, f"max abs error {max_err}"
    print("KERNEL_OK")
</pallas_src>

<mosaic_0001>
module attributes {stable_mosaic.version = 11 : i64} {
  func.func @_conv_block_kernel(%arg0: i32, %arg1: memref<1x129x16xf32, #tpu.memory_space<vmem>>, %arg2: memref<129x8xf32, #tpu.memory_space<vmem>>, %arg3: memref<16x272xbf16, #tpu.memory_space<vmem>>, %arg4: memref<16x1xf32, #tpu.memory_space<vmem>>, %arg5: memref<1x16x16xf32, #tpu.memory_space<vmem>>, %arg6: memref<272x16xf32, #tpu.memory_space<vmem>>) attributes {dimension_semantics = [#tpu.dimension_semantics<parallel>], iteration_bounds = array<i64: 2>, scalar_prefetch = 0 : i64, scratch_operands = 1 : i64, tpu.core_type = #tpu.core_type<tc>, window_params = [{transform_indices = @transform_0, window_bounds = array<i64: 1, 129, 16>}, {pipeline_mode = #tpu.pipeline_mode<synchronous>, transform_indices = @transform_1, window_bounds = array<i64: 129, 8>}, {pipeline_mode = #tpu.pipeline_mode<synchronous>, transform_indices = @transform_2, window_bounds = array<i64: 16, 272>}, {pipeline_mode = #tpu.pipeline_mode<synchronous>, transform_indices = @transform_3, window_bounds = array<i64: 16, 1>}, {transform_indices = @transform_4, window_bounds = array<i64: 1, 16, 16>}]} {
    %c0 = arith.constant 0 : index
    %c0_0 = arith.constant 0 : index
    %c0_1 = arith.constant 0 : index
    %0 = vector.load %arg1[%c0, %c0_0, %c0_1] : memref<1x129x16xf32, #tpu.memory_space<vmem>>, vector<1x129x16xf32>
    %1 = vector.shape_cast %0 : vector<1x129x16xf32> to vector<129x16xf32>
    %2 = tpu.iota {dimensions = array<i32: 1>} : vector<129x16xi32>
    %c0_2 = arith.constant 0 : index
    %c2 = arith.constant 2 : index
    %3 = vector.load %arg2[%c0_2, %c2] : memref<129x8xf32, #tpu.memory_space<vmem>>, vector<129x1xf32>
    %4 = vector.broadcast %3 : vector<129x1xf32> to vector<129x16xf32>
    %5 = arith.mulf %4, %1 : vector<129x16xf32>
    %c2_i32 = arith.constant 2 : i32
    %6 = tpu.dynamic_rotate %1 by %c2_i32 dim 1 : vector<129x16xf32>, i32 -> vector<129x16xf32>
    %c-2_i32 = arith.constant -2 : i32
    %7 = vector.broadcast %c-2_i32 : i32 to vector<129x16xi32>
    %8 = arith.addi %2, %7 : vector<129x16xi32>
    %c0_i32 = arith.constant 0 : i32
    %9 = vector.broadcast %c0_i32 : i32 to vector<129x16xi32>
    %10 = arith.cmpi sge, %8, %9 : vector<129x16xi32>
    %c-2_i32_3 = arith.constant -2 : i32
    %11 = vector.broadcast %c-2_i32_3 : i32 to vector<129x16xi32>
    %12 = arith.addi %2, %11 : vector<129x16xi32>
    %c16_i32 = arith.constant 16 : i32
    %13 = vector.broadcast %c16_i32 : i32 to vector<129x16xi32>
    %14 = arith.cmpi slt, %12, %13 : vector<129x16xi32>
    %15 = arith.andi %10, %14 : vector<129x16xi1>
    %c0_4 = arith.constant 0 : index
    %c0_5 = arith.constant 0 : index
    %16 = vector.load %arg2[%c0_4, %c0_5] : memref<129x8xf32, #tpu.memory_space<vmem>>, vector<129x1xf32>
    %cst = arith.constant 0.000000e+00 : f32
    %17 = vector.broadcast %cst : f32 to vector<129x16xf32>
    %18 = arith.select %15, %6, %17 : vector<129x16xi1>, vector<129x16xf32>
    %19 = vector.broadcast %16 : vector<129x1xf32> to vector<129x16xf32>
    %20 = arith.mulf %19, %18 : vector<129x16xf32>
    %21 = arith.addf %5, %20 : vector<129x16xf32>
    %c1_i32 = arith.constant 1 : i32
    %22 = tpu.dynamic_rotate %1 by %c1_i32 dim 1 : vector<129x16xf32>, i32 -> vector<129x16xf32>
    %c-1_i32 = arith.constant -1 : i32
    %23 = vector.broadcast %c-1_i32 : i32 to vector<129x16xi32>
    %24 = arith.addi %2, %23 : vector<129x16xi32>
    %c0_i32_6 = arith.constant 0 : i32
    %25 = vector.broadcast %c0_i32_6 : i32 to vector<129x16xi32>
    %26 = arith.cmpi sge, %24, %25 : vector<129x16xi32>
    %c-1_i32_7 = arith.constant -1 : i32
    %27 = vector.broadcast %c-1_i32_7 : i32 to vector<129x16xi32>
    %28 = arith.addi %2, %27 : vector<129x16xi32>
    %c16_i32_8 = arith.constant 16 : i32
    %29 = vector.broadcast %c16_i32_8 : i32 to vector<129x16xi32>
    %30 = arith.cmpi slt, %28, %29 : vector<129x16xi32>
    %31 = arith.andi %26, %30 : vector<129x16xi1>
    %c0_9 = arith.constant 0 : index
    %c1 = arith.constant 1 : index
    %32 = vector.load %arg2[%c0_9, %c1] : memref<129x8xf32, #tpu.memory_space<vmem>>, vector<129x1xf32>
    %cst_10 = arith.constant 0.000000e+00 : f32
    %33 = vector.broadcast %cst_10 : f32 to vector<129x16xf32>
    %34 = arith.select %31, %22, %33 : vector<129x16xi1>, vector<129x16xf32>
    %35 = vector.broadcast %32 : vector<129x1xf32> to vector<129x16xf32>
    %36 = arith.mulf %35, %34 : vector<129x16xf32>
    %37 = arith.addf %21, %36 : vector<129x16xf32>
    %c15_i32 = arith.constant 15 : i32
    %38 = tpu.dynamic_rotate %1 by %c15_i32 dim 1 : vector<129x16xf32>, i32 -> vector<129x16xf32>
    %c1_i32_11 = arith.constant 1 : i32
    %39 = vector.broadcast %c1_i32_11 : i32 to vector<129x16xi32>
    %40 = arith.addi %2, %39 : vector<129x16xi32>
    %c0_i32_12 = arith.constant 0 : i32
    %41 = vector.broadcast %c0_i32_12 : i32 to vector<129x16xi32>
    %42 = arith.cmpi sge, %40, %41 : vector<129x16xi32>
    %c1_i32_13 = arith.constant 1 : i32
    %43 = vector.broadcast %c1_i32_13 : i32 to vector<129x16xi32>
    %44 = arith.addi %2, %43 : vector<129x16xi32>
    %c16_i32_14 = arith.constant 16 : i32
    %45 = vector.broadcast %c16_i32_14 : i32 to vector<129x16xi32>
    %46 = arith.cmpi slt, %44, %45 : vector<129x16xi32>
    %47 = arith.andi %42, %46 : vector<129x16xi1>
    %c0_15 = arith.constant 0 : index
    %c3 = arith.constant 3 : index
    %48 = vector.load %arg2[%c0_15, %c3] : memref<129x8xf32, #tpu.memory_space<vmem>>, vector<129x1xf32>
    %cst_16 = arith.constant 0.000000e+00 : f32
    %49 = vector.broadcast %cst_16 : f32 to vector<129x16xf32>
    %50 = arith.select %47, %38, %49 : vector<129x16xi1>, vector<129x16xf32>
    %51 = vector.broadcast %48 : vector<129x1xf32> to vector<129x16xf32>
    %52 = arith.mulf %51, %50 : vector<129x16xf32>
    %53 = arith.addf %37, %52 : vector<129x16xf32>
    %c14_i32 = arith.constant 14 : i32
    %54 = tpu.dynamic_rotate %1 by %c14_i32 dim 1 : vector<129x16xf32>, i32 -> vector<129x16xf32>
    %c2_i32_17 = arith.constant 2 : i32
    %55 = vector.broadcast %c2_i32_17 : i32 to vector<129x16xi32>
    %56 = arith.addi %2, %55 : vector<129x16xi32>
    %c0_i32_18 = arith.constant 0 : i32
    %57 = vector.broadcast %c0_i32_18 : i32 to vector<129x16xi32>
    %58 = arith.cmpi sge, %56, %57 : vector<129x16xi32>
    %c2_i32_19 = arith.constant 2 : i32
    %59 = vector.broadcast %c2_i32_19 : i32 to vector<129x16xi32>
    %60 = arith.addi %2, %59 : vector<129x16xi32>
    %c16_i32_20 = arith.constant 16 : i32
    %61 = vector.broadcast %c16_i32_20 : i32 to vector<129x16xi32>
    %62 = arith.cmpi slt, %60, %61 : vector<129x16xi32>
    %63 = arith.andi %58, %62 : vector<129x16xi1>
    %c0_21 = arith.constant 0 : index
    %c4 = arith.constant 4 : index
    %64 = vector.load %arg2[%c0_21, %c4] : memref<129x8xf32, #tpu.memory_space<vmem>>, vector<129x1xf32>
    %cst_22 = arith.constant 0.000000e+00 : f32
    %65 = vector.broadcast %cst_22 : f32 to vector<129x16xf32>
    %66 = arith.select %63, %54, %65 : vector<129x16xi1>, vector<129x16xf32>
    %67 = vector.broadcast %64 : vector<129x1xf32> to vector<129x16xf32>
    %68 = arith.mulf %67, %66 : vector<129x16xf32>
    %69 = arith.addf %53, %68 : vector<129x16xf32>
    %c0_23 = arith.constant 0 : index
    %c5 = arith.constant 5 : index
    %70 = vector.load %arg2[%c0_23, %c5] : memref<129x8xf32, #tpu.memory_space<vmem>>, vector<129x1xf32>
    %71 = vector.broadcast %70 : vector<129x1xf32> to vector<129x16xf32>
    %72 = arith.addf %69, %71 : vector<129x16xf32>
    %cst_24 = arith.constant 0.000000e+00 : f32
    %73 = vector.broadcast %cst_24 : f32 to vector<129x16xf32>
    %74 = arith.maximumf %72, %73 : vector<129x16xf32>
    %cst_25 = arith.constant 0.000000e+00 : f32
    %75 = vector.broadcast %cst_25 : f32 to vector<8x16xf32>
    %c128 = arith.constant 128 : index
    %c0_26 = arith.constant 0 : index
    %76 = vector.load %arg6[%c128, %c0_26] : memref<272x16xf32, #tpu.memory_space<vmem>>, vector<8x16xf32>
    tpu.vector_store %arg6[%c128, %c0_26], %75 {strides = array<i32>} : memref<272x16xf32, #tpu.memory_space<vmem>>, vector<8x16xf32>,
    %c264 = arith.constant 264 : index
    %c0_27 = arith.constant 0 : index
    %77 = vector.load %arg6[%c264, %c0_27] : memref<272x16xf32, #tpu.memory_space<vmem>>, vector<8x16xf32>
    tpu.vector_store %arg6[%c264, %c0_27], %75 {strides = array<i32>} : memref<272x16xf32, #tpu.memory_space<vmem>>, vector<8x16xf32>,
    %c0_28 = arith.constant 0 : index
    %c0_29 = arith.constant 0 : index
    %78 = vector.load %arg6[%c0_28, %c0_29] : memref<272x16xf32, #tpu.memory_space<vmem>>, vector<129x16xf32>
    tpu.vector_store %arg6[%c0_28, %c0_29], %74 {strides = array<i32>} : memref<272x16xf32, #tpu.memory_space<vmem>>, vector<129x16xf32>,
    %c136 = arith.constant 136 : index
    %c0_30 = arith.constant 0 : index
    %79 = vector.load %arg6[%c136, %c0_30] : memref<272x16xf32, #tpu.memory_space<vmem>>, vector<129x16xf32>
    tpu.vector_store %arg6[%c136, %c0_30], %1 {strides = array<i32>} : memref<272x16xf32, #tpu.memory_space<vmem>>, vector<129x16xf32>,
    %c0_31 = arith.constant 0 : index
    %c0_32 = arith.constant 0 : index
    %80 = vector.load %arg6[%c0_31, %c0_32] : memref<272x16xf32, #tpu.memory_space<vmem>>, vector<272x16xf32>
    %81 = arith.truncf %80 : vector<272x16xf32> to vector<272x16xbf16>
    %c0_33 = arith.constant 0 : index
    %c0_34 = arith.constant 0 : index
    %82 = vector.load %arg3[%c0_33, %c0_34] : memref<16x272xbf16, #tpu.memory_space<vmem>>, vector<16x272xbf16>
    %cst_35 = arith.constant dense<0.000000e+00> : vector<16x16xf32>
    %83 = tpu.matmul %82, %81, %cst_35 {dimension_numbers = #tpu.dot_dimension_numbers<[1], [0], [0], [1], [0, 0, 1, 1], [], []>} : vector<16x272xbf16>, vector<272x16xbf16>, vector<16x16xf32> -> vector<16x16xf32>
    %c0_36 = arith.constant 0 : index
    %c0_37 = arith.constant 0 : index
    %84 = vector.load %arg4[%c0_36, %c0_37] : memref<16x1xf32, #tpu.memory_space<vmem>>, vector<16x1xf32>
    %85 = vector.broadcast %84 : vector<16x1xf32> to vector<16x16xf32>
    %86 = arith.addf %83, %85 : vector<16x16xf32>
    %cst_38 = arith.constant 0.000000e+00 : f32
    %87 = vector.broadcast %cst_38 : f32 to vector<16x16xf32>
    %88 = arith.maximumf %86, %87 : vector<16x16xf32>
    %c0_39 = arith.constant 0 : index
    %c0_40 = arith.constant 0 : index
    %c0_41 = arith.constant 0 : index
    %89 = vector.load %arg5[%c0_39, %c0_40, %c0_41] : memref<1x16x16xf32, #tpu.memory_space<vmem>>, vector<1x16x16xf32>
    %90 = vector.shape_cast %89 : vector<1x16x16xf32> to vector<16x16xf32>
    %91 = vector.shape_cast %88 : vector<16x16xf32> to vector<1x16x16xf32>
    tpu.vector_store %arg5[%c0_39, %c0_40, %c0_41], %91 {strides = array<i32>} : memref<1x16x16xf32, #tpu.memory_space<vmem>>, vector<1x16x16xf32>,
    return
  }
  func.func @transform_0(%arg0: i32) -> (i32, i32, i32) {
    %c0_i32 = arith.constant 0 : i32
    %c0_i32_0 = arith.constant 0 : i32
    %c0_i32_1 = arith.constant 0 : i32
    return %arg0, %c0_i32, %c0_i32_0 : i32, i32, i32
  }
  func.func @transform_1(%arg0: i32) -> (i32, i32) {
    %c0_i32 = arith.constant 0 : i32
    %c0_i32_0 = arith.constant 0 : i32
    %c0_i32_1 = arith.constant 0 : i32
    return %c0_i32, %c0_i32_0 : i32, i32
  }
  func.func @transform_2(%arg0: i32) -> (i32, i32) {
    %c0_i32 = arith.constant 0 : i32
    %c0_i32_0 = arith.constant 0 : i32
    %c0_i32_1 = arith.constant 0 : i32
    return %c0_i32, %c0_i32_0 : i32, i32
  }
  func.func @transform_3(%arg0: i32) -> (i32, i32) {
    %c0_i32 = arith.constant 0 : i32
    %c0_i32_0 = arith.constant 0 : i32
    %c0_i32_1 = arith.constant 0 : i32
    return %c0_i32, %c0_i32_0 : i32, i32
  }
  func.func @transform_4(%arg0: i32) -> (i32, i32, i32) {
    %c0_i32 = arith.constant 0 : i32
    %c0_i32_0 = arith.constant 0 : i32
    %c0_i32_1 = arith.constant 0 : i32
    return %arg0, %c0_i32, %c0_i32_0 : i32, i32, i32
  }
}

</mosaic_0001>

<llo_original>
// kernel: tpu_custom_call.1
$region0: #{tpu_custom_call.1}
  #allocation0 [shape = 'u32[]', space=smem, size = 0x4, offset = 0x4, fixed_abs, tag = 'smem constant byte address 0x4 - core index']
  #allocation1 [shape = 'u32[144,128]{1,0:T(1,128)}', space=vmem, size = 0x12000, scoped, tag = 'internal scratch']
  #allocation2 [shape = 'f32[272,16]{1,0:T(8,128)}', space=vmem, size = 0x22000, scoped, tag = 'scratch operand']
  %s0 = inlined_call_operand.vmem [shape: f32[2,129,16], index: 0, kind: input, shape index: {}]
  %s1 = inlined_call_operand.vmem [shape: f32[129,8], index: 1, kind: input, shape index: {}]
  %s2 = inlined_call_operand.vmem [shape: bf16[16,272], index: 2, kind: input, shape index: {}]
  %s3 = inlined_call_operand.vmem [shape: f32[16,1], index: 3, kind: input, shape index: {}]
  %s4 = inlined_call_operand.hbm [shape: f32[2,16,16], index: 4, kind: output, shape index: {}]
  %s5 = sld [smem:[#allocation0]]
  $region49: #{tpu_custom_call.1} parent=0
    _
  %s7 = ssub.s32 1, %s5
  %s8 = scalar_select 0, %s7, %s5
  $region1: #{tpu_custom_call.1} parent=0
    #allocation3 [shape = 'u8[16384]{0}', space=vmem, size = 0x4000, scoped, tag = 'output window, operand 0']
    #allocation4 [shape = 's32[2]{0}', space=sflag, size = 0x8, scoped, tag = 'scoped memory for tpu_custom_call.1']
    %9 = vsyncpa [#allocation4], 0
    %s10 = scalar_lea.sflag [#allocation4], 1
    %11 = vsyncpa %s10, 0
    loop: start=0, step=1, limit=4
    $region2: #{tpu_custom_call.1} parent=1 // loop_pre_header
      _
    $region3: #{tpu_custom_call.1} parent=1 // loop_header
      %s13 = sphi 0, %s17
      %p14 = scmp.ge.s32.totalorder %s13, 4
      %s23 = sphi 0, %s25
      %s26 = sphi 0, %s23
      %s27 = sphi 0, %s26
      %s43 = sphi 0, %s27
      %s47 = sphi 0, %s47
      %s49 = sphi 0, %s47
      %s50 = sphi 0, %s49
      %s64 = sphi 0, %s50
      %s68 = sphi 0, %s68
      %s70 = sphi 0, %s68
      %s71 = sphi 0, %s70
      %s85 = sphi 0, %s71
      %s89 = sphi 0, %s89
      %s91 = sphi 0, %s89
      %s92 = sphi 0, %s91
      %s106 = sphi 0, %s92
      %s112 = sphi 0, %s114
      %s115 = sphi 0, %s112
      %s116 = sphi 0, %s115
      %s132 = sphi 0, %s116
    $region4: #{tpu_custom_call.1} parent=1 // loop_header_branch
      %16 = sbr.rel (%p14) target = $region8
    $region5: #{tpu_custom_call.1} parent=1 // loop_body
      %s18 = ssub.s32 %s13, 1
      %s19 = ssub.s32 %s13, 2
      %s20 = sadd.s32 %s13, 1
      %s21 = ssub.s32 %s13, %s20
      %p22 = scmp.eq.s32.totalorder %s21, 0
      %s24 = sadd.s32 %s23, 1
      %s25 = scalar_select %p22, %s23, %s24
      %p28 = pneg %p22
      %p29 = scmp.eq.s32.totalorder %s13, 1
      %p30 = por %p28, %p29
      %p31 = scmp.ne.s32.totalorder %s23, %s26
      %p32 = scmp.eq.s32.totalorder %s13, 0
      %p33 = por %p31, %p32
      %p34 = scmp.ne.s32.totalorder %s23, %s26
      %p35 = scmp.eq.s32.totalorder %s18, 1
      %p36 = por %p34, %p35
      %p37 = scmp.ne.s32.totalorder %s26, %s27
      %p38 = scmp.eq.s32.totalorder %s18, 0
      %p39 = por %p37, %p38
      %p40 = scmp.ne.s32.totalorder %s26, %s27
      %p41 = scmp.eq.s32.totalorder %s19, 1
      %p42 = por %p40, %p41
      %p44 = scmp.ne.s32.totalorder %s27, %s43
      %p45 = scmp.eq.s32.totalorder %s19, 0
      %p46 = por %p44, %p45
      %s48 = sadd.s32 %s47, 1
      %p51 = scmp.eq.s32.totalorder %s13, 1
      %p52 = scmp.ne.s32.totalorder %s47, %s49
      %p53 = scmp.eq.s32.totalorder %s13, 0
      %p54 = por %p52, %p53
      %p55 = scmp.ne.s32.totalorder %s47, %s49
      %p56 = scmp.eq.s32.totalorder %s18, 1
      %p57 = por %p55, %p56
      %p58 = scmp.ne.s32.totalorder %s49, %s50
      %p59 = scmp.eq.s32.totalorder %s18, 0
      %p60 = por %p58, %p59
      %p61 = scmp.ne.s32.totalorder %s49, %s50
      %p62 = scmp.eq.s32.totalorder %s19, 1
      %p63 = por %p61, %p62
      %p65 = scmp.ne.s32.totalorder %s50, %s64
      %p66 = scmp.eq.s32.totalorder %s19, 0
      %p67 = por %p65, %p66
      %s69 = sadd.s32 %s68, 1
      %p72 = scmp.eq.s32.totalorder %s13, 1
      %p73 = scmp.ne.s32.totalorder %s68, %s70
      %p74 = scmp.eq.s32.totalorder %s13, 0
      %p75 = por %p73, %p74
      %p76 = scmp.ne.s32.totalorder %s68, %s70
      %p77 = scmp.eq.s32.totalorder %s18, 1
      %p78 = por %p76, %p77
      %p79 = scmp.ne.s32.totalorder %s70, %s71
      %p80 = scmp.eq.s32.totalorder %s18, 0
      %p81 = por %p79, %p80
      %p82 = scmp.ne.s32.totalorder %s70, %s71
      %p83 = scmp.eq.s32.totalorder %s19, 1
      %p84 = por %p82, %p83
      %p86 = scmp.ne.s32.totalorder %s71, %s85
      %p87 = scmp.eq.s32.totalorder %s19, 0
      %p88 = por %p86, %p87
      %s90 = sadd.s32 %s89, 1
      %p93 = scmp.eq.s32.totalorder %s13, 1
      %p94 = scmp.ne.s32.totalorder %s89, %s91
      %p95 = scmp.eq.s32.totalorder %s13, 0
      %p96 = por %p94, %p95
      %p97 = scmp.ne.s32.totalorder %s89, %s91
      %p98 = scmp.eq.s32.totalorder %s18, 1
      %p99 = por %p97, %p98
      %p100 = scmp.ne.s32.totalorder %s91, %s92
      %p101 = scmp.eq.s32.totalorder %s18, 0
      %p102 = por %p100, %p101
      %p103 = scmp.ne.s32.totalorder %s91, %s92
      %p104 = scmp.eq.s32.totalorder %s19, 1
      %p105 = por %p103, %p104
      %p107 = scmp.ne.s32.totalorder %s92, %s106
      %p108 = scmp.eq.s32.totalorder %s19, 0
      %p109 = por %p107, %p108
      %s110 = ssub.s32 %s13, %s20
      %p111 = scmp.eq.s32.totalorder %s110, 0
      %s113 = sadd.s32 %s112, 1
      %s114 = scalar_select %p111, %s112, %s113
      %p117 = pneg %p111
      %p118 = scmp.eq.s32.totalorder %s13, 1
      %p119 = por %p117, %p118
      %p120 = scmp.ne.s32.totalorder %s112, %s115
      %p121 = scmp.eq.s32.totalorder %s13, 0
      %p122 = por %p120, %p121
      %p123 = scmp.ne.s32.totalorder %s112, %s115
      %p124 = scmp.eq.s32.totalorder %s18, 1
      %p125 = por %p123, %p124
      %p126 = scmp.ne.s32.totalorder %s115, %s116
      %p127 = scmp.eq.s32.totalorder %s18, 0
      %p128 = por %p126, %p127
      %p129 = scmp.ne.s32.totalorder %s115, %s116
      %p130 = scmp.eq.s32.totalorder %s19, 1
      %p131 = por %p129, %p130
      %p133 = scmp.ne.s32.totalorder %s116, %s132
      %p134 = scmp.eq.s32.totalorder %s19, 0
      %p135 = por %p133, %p134
      %p136 = scmp.le.s32.totalorder 1, %s13
      %p137 = scmp.lt.s32.totalorder %s13, 3
      %p138 = pnand %p136, %p137
      %p139 = pneg %p138
      // Predicated region
      $region9: #{tpu_custom_call.1} parent=5 // pred_check
        _
      $region10: #{tpu_custom_call.1} parent=5 // pred_check_branch
        %141 = sbr.rel (%p138) target = $region12
      $region11: #{tpu_custom_call.1} parent=5 // pred_region
        %s142 = ssub.s32 %s13, 1
        // Predicated region
        $region13: #{tpu_custom_call.1} parent=11 // pred_check
          %p143 = pneg %p60
        $region14: #{tpu_custom_call.1} parent=11 // pred_check_branch
          %145 = sbr.rel (%p143) target = $region16
        $region15: #{tpu_custom_call.1} parent=11 // pred_region
          _
        $region16: #{tpu_custom_call.1} parent=11 // pred_fallthru
          _
        // Predicated region
        $region17: #{tpu_custom_call.1} parent=11 // pred_check
          %p146 = pneg %p81
        $region18: #{tpu_custom_call.1} parent=11 // pred_check_branch
          %148 = sbr.rel (%p146) target = $region20
        $region19: #{tpu_custom_call.1} parent=11 // pred_region
          _
        $region20: #{tpu_custom_call.1} parent=11 // pred_fallthru
          _
        // Predicated region
        $region21: #{tpu_custom_call.1} parent=11 // pred_check
          %p149 = pneg %p102
        $region22: #{tpu_custom_call.1} parent=11 // pred_check_branch
          %151 = sbr.rel (%p149) target = $region24
        $region23: #{tpu_custom_call.1} parent=11 // pred_region
          _
        $region24: #{tpu_custom_call.1} parent=11 // pred_fallthru
          _
      $region12: #{tpu_custom_call.1} parent=5 // pred_fallthru
        _
      %p152 = scmp.lt.s32.totalorder %s13, 2
      // Predicated region
      $region25: #{tpu_custom_call.1} parent=5 // pred_check
        %p153 = pneg %p152
      $region26: #{tpu_custom_call.1} parent=5 // pred_check_branch
        %155 = sbr.rel (%p153) target = $region28
      $region27: #{tpu_custom_call.1} parent=5 // pred_region
        // Predicated region
        $region29: #{tpu_custom_call.1} parent=27 // pred_check
          %p156 = pneg %p33
        $region30: #{tpu_custom_call.1} parent=27 // pred_check_branch
          %158 = sbr.rel (%p156) target = $region32
        $region31: #{tpu_custom_call.1} parent=27 // pred_region
          %p159 = scmp.lt.s32.totalorder %s13, 1
          %s160 = scalar_select %p159, %s13, 1
          %s161 = smul.addr %s160, 17
          %s162 = smul.addr %s161, 8
          %s163 = scalar_lea.vmem %s0, %s162
        $region32: #{tpu_custom_call.1} parent=27 // pred_fallthru
          _
      $region28: #{tpu_custom_call.1} parent=5 // pred_fallthru
        _
      %p164 = scmp.le.s32.totalorder 1, %s13
      %p165 = scmp.lt.s32.totalorder %s13, 3
      %p166 = pnand %p164, %p165
      %p167 = pneg %p166
      // Predicated region
      $region33: #{tpu_custom_call.1} parent=5 // pred_check
        _
      $region34: #{tpu_custom_call.1} parent=5 // pred_check_branch
        %169 = sbr.rel (%p166) target = $region36
      $region35: #{tpu_custom_call.1} parent=5 // pred_region
        %s170 = ssub.s32 %s13, 1
        %p171 = scmp.lt.s32.totalorder %s18, 1
        %s172 = scalar_select %p171, %s18, 1
        %s173 = smul.addr %s172, 17
        %s174 = smul.addr %s173, 8
        %s175 = scalar_lea.vmem %s0, %s174
        %p176 = pneg %p39
        %p177 = pneg %p36
        %p178 = pneg %p60
        %p179 = pneg %p57
        %p180 = pneg %p81
        %p181 = pneg %p78
        %p182 = pneg %p102
        %p183 = pneg %p99
        %p184 = pneg %p128
        %p185 = pneg %p125
        %s186 = sand.u32 %s115, 1
        %s187 = scalar_lea.sflag [#allocation4], %s186
        %s188 = sand.u32 %s115, 1
        %s189 = smul.addr %s188, 16
        %s190 = scalar_lea.vmem [#allocation3], %s189
        %p191 = scmp.lt.s32.totalorder %s18, 1
        %s192 = scalar_select %p191, %s18, 1
        %s193 = smul.addr %s192, 17
        %s194 = smul.addr %s193, 8
        %s195 = scalar_lea.vmem %s0, %s194
        %v197 = vld [vmem:[%s195] sm:$0xff]
        %v198 = vld [vmem:[%s195 + $0x8] sm:$0xff]
        %v199 = vld [vmem:[%s195 + $0x10] sm:$0xff]
        %v200 = vld [vmem:[%s195 + $0x18] sm:$0xff]
        %v201 = vld [vmem:[%s195 + $0x20] sm:$0xff]
        %v202 = vld [vmem:[%s195 + $0x28] sm:$0xff]
        %v203 = vld [vmem:[%s195 + $0x30] sm:$0xff]
        %v204 = vld [vmem:[%s195 + $0x38] sm:$0xff]
        %v205 = vld [vmem:[%s195 + $0x40] sm:$0xff]
        %v206 = vld [vmem:[%s195 + $0x48] sm:$0xff]
        %v207 = vld [vmem:[%s195 + $0x50] sm:$0xff]
        %v208 = vld [vmem:[%s195 + $0x58] sm:$0xff]
        %v209 = vld [vmem:[%s195 + $0x60] sm:$0xff]
        %v210 = vld [vmem:[%s195 + $0x68] sm:$0xff]
        %v211 = vld [vmem:[%s195 + $0x70] sm:$0xff]
        %v212 = vld [vmem:[%s195 + $0x78] sm:$0xff]
        %v213 = vld [vmem:[%s195 + $0x80] sm:$0x1]
        %v214 = vlaneseq
        %v215 = vand.u32 %v214, 127
        %v216 = vld [vmem:[%s1] sm:$0xff]
        %v217 = vld [vmem:[%s1 + $0x8] sm:$0xff]
        %v218 = vld [vmem:[%s1 + $0x10] sm:$0xff]
        %v219 = vld [vmem:[%s1 + $0x18] sm:$0xff]
        %v220 = vld [vmem:[%s1 + $0x20] sm:$0xff]
        %v221 = vld [vmem:[%s1 + $0x28] sm:$0xff]
        %v222 = vld [vmem:[%s1 + $0x30] sm:$0xff]
        %v223 = vld [vmem:[%s1 + $0x38] sm:$0xff]
        %v224 = vld [vmem:[%s1 + $0x40] sm:$0xff]
        %v225 = vld [vmem:[%s1 + $0x48] sm:$0xff]
        %v226 = vld [vmem:[%s1 + $0x50] sm:$0xff]
        %v227 = vld [vmem:[%s1 + $0x58] sm:$0xff]
        %v228 = vld [vmem:[%s1 + $0x60] sm:$0xff]
        %v229 = vld [vmem:[%s1 + $0x68] sm:$0xff]
        %v230 = vld [vmem:[%s1 + $0x70] sm:$0xff]
        %v231 = vld [vmem:[%s1 + $0x78] sm:$0xff]
        %v232 = vld [vmem:[%s1 + $0x80] sm:$0x1]
        %234 = vset.pattern.permute.xlu0 2
        %235 = vperm.xlu0 %234, %v216
        %v236 = vpop.permute.xlu0 %235
        %239 = vset.pattern.permute.xlu0 2
        %240 = vperm.xlu0 %239, %v217
        %v241 = vpop.permute.xlu0 %240
        %244 = vset.pattern.permute.xlu0 2
        %245 = vperm.xlu0 %244, %v218
        %v246 = vpop.permute.xlu0 %245
        %249 = vset.pattern.permute.xlu0 2
        %250 = vperm.xlu0 %249, %v219
        %v251 = vpop.permute.xlu0 %250
        %254 = vset.pattern.permute.xlu0 2
        %255 = vperm.xlu0 %254, %v220
        %v256 = vpop.permute.xlu0 %255
        %259 = vset.pattern.permute.xlu0 2
        %260 = vperm.xlu0 %259, %v221
        %v261 = vpop.permute.xlu0 %260
        %264 = vset.pattern.permute.xlu0 2
        %265 = vperm.xlu0 %264, %v222
        %v266 = vpop.permute.xlu0 %265
        %269 = vset.pattern.permute.xlu0 2
        %270 = vperm.xlu0 %269, %v223
        %v271 = vpop.permute.xlu0 %270
        %274 = vset.pattern.permute.xlu0 2
        %275 = vperm.xlu0 %274, %v224
        %v276 = vpop.permute.xlu0 %275
        %279 = vset.pattern.permute.xlu0 2
        %280 = vperm.xlu0 %279, %v225
        %v281 = vpop.permute.xlu0 %280
        %284 = vset.pattern.permute.xlu0 2
        %285 = vperm.xlu0 %284, %v226
        %v286 = vpop.permute.xlu0 %285
        %289 = vset.pattern.permute.xlu0 2
        %290 = vperm.xlu0 %289, %v227
        %v291 = vpop.permute.xlu0 %290
        %294 = vset.pattern.permute.xlu0 2
        %295 = vperm.xlu0 %294, %v228
        %v296 = vpop.permute.xlu0 %295
        %299 = vset.pattern.permute.xlu0 2
        %300 = vperm.xlu0 %299, %v229
        %v301 = vpop.permute.xlu0 %300
        %304 = vset.pattern.permute.xlu0 2
        %305 = vperm.xlu0 %304, %v230
        %v306 = vpop.permute.xlu0 %305
        %309 = vset.pattern.permute.xlu0 2
        %310 = vperm.xlu0 %309, %v231
        %v311 = vpop.permute.xlu0 %310
        %314 = vset.pattern.permute.xlu0 2
        %315 = vperm.xlu0 %314, %v232
        %v316 = vpop.permute.xlu0 %315
        %v318 = vmul.f32 %v236, %v197
        %v319 = vmul.f32 %v241, %v198
        %v320 = vmul.f32 %v246, %v199
        %v321 = vmul.f32 %v251, %v200
        %v322 = vmul.f32 %v256, %v201
        %v323 = vmul.f32 %v261, %v202
        %v324 = vmul.f32 %v266, %v203
        %v325 = vmul.f32 %v271, %v204
        %v326 = vmul.f32 %v276, %v205
        %v327 = vmul.f32 %v281, %v206
        %v328 = vmul.f32 %v286, %v207
        %v329 = vmul.f32 %v291, %v208
        %v330 = vmul.f32 %v296, %v209
        %v331 = vmul.f32 %v301, %v210
        %v332 = vmul.f32 %v306, %v211
        %v333 = vmul.f32 %v311, %v212
        %v334 = vmul.f32 %v316, %v213
        %vm335 = vcmask 1047680
        %336 = vrot.lane.b32.xlu0 %v197, 16
        %v337 = vpop.permute.xlu0 %336
        %v338 = vsel %vm335, %v337, %v197
        %339 = vrot.lane.b32.xlu0 %v198, 16
        %v340 = vpop.permute.xlu0 %339
        %v341 = vsel %vm335, %v340, %v198
        %342 = vrot.lane.b32.xlu0 %v199, 16
        %v343 = vpop.permute.xlu0 %342
        %v344 = vsel %vm335, %v343, %v199
        %345 = vrot.lane.b32.xlu0 %v200, 16
        %v346 = vpop.permute.xlu0 %345
        %v347 = vsel %vm335, %v346, %v200
        %348 = vrot.lane.b32.xlu0 %v201, 16
        %v349 = vpop.permute.xlu0 %348
        %v350 = vsel %vm335, %v349, %v201
        %351 = vrot.lane.b32.xlu0 %v202, 16
        %v352 = vpop.permute.xlu0 %351
        %v353 = vsel %vm335, %v352, %v202
        %354 = vrot.lane.b32.xlu0 %v203, 16
        %v355 = vpop.permute.xlu0 %354
        %v356 = vsel %vm335, %v355, %v203
        %357 = vrot.lane.b32.xlu0 %v204, 16
        %v358 = vpop.permute.xlu0 %357
        %v359 = vsel %vm335, %v358, %v204
        %360 = vrot.lane.b32.xlu0 %v205, 16
        %v361 = vpop.permute.xlu0 %360
        %v362 = vsel %vm335, %v361, %v205
        %363 = vrot.lane.b32.xlu0 %v206, 16
        %v364 = vpop.permute.xlu0 %363
        %v365 = vsel %vm335, %v364, %v206
        %366 = vrot.lane.b32.xlu0 %v207, 16
        %v367 = vpop.permute.xlu0 %366
        %v368 = vsel %vm335, %v367, %v207
        %369 = vrot.lane.b32.xlu0 %v208, 16
        %v370 = vpop.permute.xlu0 %369
        %v371 = vsel %vm335, %v370, %v208
        %372 = vrot.lane.b32.xlu0 %v209, 16
        %v373 = vpop.permute.xlu0 %372
        %v374 = vsel %vm335, %v373, %v209
        %375 = vrot.lane.b32.xlu0 %v210, 16
        %v376 = vpop.permute.xlu0 %375
        %v377 = vsel %vm335, %v376, %v210
        %378 = vrot.lane.b32.xlu0 %v211, 16
        %v379 = vpop.permute.xlu0 %378
        %v380 = vsel %vm335, %v379, %v211
        %381 = vrot.lane.b32.xlu0 %v212, 16
        %v382 = vpop.permute.xlu0 %381
        %v383 = vsel %vm335, %v382, %v212
        %384 = vrot.lane.b32.xlu0 %v213, 16
        %v385 = vpop.permute.xlu0 %384
        %v386 = vsel %vm335, %v385, %v213
        %387 = vrot.lane.b32.xlu0 %v338, 16
        %v388 = vpop.permute.xlu0 %387
        %389 = vrot.lane.b32.xlu0 %v341, 16
        %v390 = vpop.permute.xlu0 %389
        %391 = vrot.lane.b32.xlu0 %v344, 16
        %v392 = vpop.permute.xlu0 %391
        %393 = vrot.lane.b32.xlu0 %v347, 16
        %v394 = vpop.permute.xlu0 %393
        %395 = vrot.lane.b32.xlu0 %v350, 16
        %v396 = vpop.permute.xlu0 %395
        %397 = vrot.lane.b32.xlu0 %v353, 16
        %v398 = vpop.permute.xlu0 %397
        %399 = vrot.lane.b32.xlu0 %v356, 16
        %v400 = vpop.permute.xlu0 %399
        %401 = vrot.lane.b32.xlu0 %v359, 16
        %v402 = vpop.permute.xlu0 %401
        %403 = vrot.lane.b32.xlu0 %v362, 16
        %v404 = vpop.permute.xlu0 %403
        %405 = vrot.lane.b32.xlu0 %v365, 16
        %v406 = vpop.permute.xlu0 %405
        %407 = vrot.lane.b32.xlu0 %v368, 16
        %v408 = vpop.permute.xlu0 %407
        %409 = vrot.lane.b32.xlu0 %v371, 16
        %v410 = vpop.permute.xlu0 %409
        %411 = vrot.lane.b32.xlu0 %v374, 16
        %v412 = vpop.permute.xlu0 %411
        %413 = vrot.lane.b32.xlu0 %v377, 16
        %v414 = vpop.permute.xlu0 %413
        %415 = vrot.lane.b32.xlu0 %v380, 16
        %v416 = vpop.permute.xlu0 %415
        %417 = vrot.lane.b32.xlu0 %v383, 16
        %v418 = vpop.permute.xlu0 %417
        %419 = vrot.lane.b32.xlu0 %v386, 16
        %v420 = vpop.permute.xlu0 %419
        %v421 = vsel %vm335, %v388, %v197
        %v422 = vsel %vm335, %v390, %v198
        %v423 = vsel %vm335, %v392, %v199
        %v424 = vsel %vm335, %v394, %v200
        %v425 = vsel %vm335, %v396, %v201
        %v426 = vsel %vm335, %v398, %v202
        %v427 = vsel %vm335, %v400, %v203
        %v428 = vsel %vm335, %v402, %v204
        %v429 = vsel %vm335, %v404, %v205
        %v430 = vsel %vm335, %v406, %v206
        %v431 = vsel %vm335, %v408, %v207
        %v432 = vsel %vm335, %v410, %v208
        %v433 = vsel %vm335, %v412, %v209
        %v434 = vsel %vm335, %v414, %v210
        %v435 = vsel %vm335, %v416, %v211
        %v436 = vsel %vm335, %v418, %v212
        %v437 = vsel %vm335, %v420, %v213
        %v438 = vadd.s32 %v215, 4294967294
        %vm439 = vcmp.ge.s32.totalorder %v438, 0
        %vm440 = vcmp.lt.s32.totalorder %v438, 16
        %vm441 = vmand %vm439, %vm440
        %459 = vrot.lane.b32.xlu0 %v421, 114
        %v460 = vpop.permute.xlu0 %459
        %461 = vrot.lane.b32.xlu0 %v422, 114
        %v462 = vpop.permute.xlu0 %461
        %463 = vrot.lane.b32.xlu0 %v423, 114
        %v464 = vpop.permute.xlu0 %463
        %465 = vrot.lane.b32.xlu0 %v424, 114
        %v466 = vpop.permute.xlu0 %465
        %467 = vrot.lane.b32.xlu0 %v425, 114
        %v468 = vpop.permute.xlu0 %467
        %469 = vrot.lane.b32.xlu0 %v426, 114
        %v470 = vpop.permute.xlu0 %469
        %471 = vrot.lane.b32.xlu0 %v427, 114
        %v472 = vpop.permute.xlu0 %471
        %473 = vrot.lane.b32.xlu0 %v428, 114
        %v474 = vpop.permute.xlu0 %473
        %475 = vrot.lane.b32.xlu0 %v429, 114
        %v476 = vpop.permute.xlu0 %475
        %477 = vrot.lane.b32.xlu0 %v430, 114
        %v478 = vpop.permute.xlu0 %477
        %479 = vrot.lane.b32.xlu0 %v431, 114
        %v480 = vpop.permute.xlu0 %479
        %481 = vrot.lane.b32.xlu0 %v432, 114
        %v482 = vpop.permute.xlu0 %481
        %483 = vrot.lane.b32.xlu0 %v433, 114
        %v484 = vpop.permute.xlu0 %483
        %485 = vrot.lane.b32.xlu0 %v434, 114
        %v486 = vpop.permute.xlu0 %485
        %487 = vrot.lane.b32.xlu0 %v435, 114
        %v488 = vpop.permute.xlu0 %487
        %489 = vrot.lane.b32.xlu0 %v436, 114
        %v490 = vpop.permute.xlu0 %489
        %491 = vrot.lane.b32.xlu0 %v437, 114
        %v492 = vpop.permute.xlu0 %491
        %v510 = vsel %vm441, %v460, 0.0
        %v511 = vsel %vm441, %v462, 0.0
        %v512 = vsel %vm441, %v464, 0.0
        %v513 = vsel %vm441, %v466, 0.0
        %v514 = vsel %vm441, %v468, 0.0
        %v515 = vsel %vm441, %v470, 0.0
        %v516 = vsel %vm441, %v472, 0.0
        %v517 = vsel %vm441, %v474, 0.0
        %v518 = vsel %vm441, %v476, 0.0
        %v519 = vsel %vm441, %v478, 0.0
        %v520 = vsel %vm441, %v480, 0.0
        %v521 = vsel %vm441, %v482, 0.0
        %v522 = vsel %vm441, %v484, 0.0
        %v523 = vsel %vm441, %v486, 0.0
        %v524 = vsel %vm441, %v488, 0.0
        %v525 = vsel %vm441, %v490, 0.0
        %v526 = vsel %vm441, %v492, 0.0
        %527 = vset.pattern.permute.xlu0 0
        %528 = vperm.xlu0 %527, %v216
        %v529 = vpop.permute.xlu0 %528
        %531 = vset.pattern.permute.xlu0 0
        %532 = vperm.xlu0 %531, %v217
        %v533 = vpop.permute.xlu0 %532
        %535 = vset.pattern.permute.xlu0 0
        %536 = vperm.xlu0 %535, %v218
        %v537 = vpop.permute.xlu0 %536
        %539 = vset.pattern.permute.xlu0 0
        %540 = vperm.xlu0 %539, %v219
        %v541 = vpop.permute.xlu0 %540
        %543 = vset.pattern.permute.xlu0 0
        %544 = vperm.xlu0 %543, %v220
        %v545 = vpop.permute.xlu0 %544
        %547 = vset.pattern.permute.xlu0 0
        %548 = vperm.xlu0 %547, %v221
        %v549 = vpop.permute.xlu0 %548
        %551 = vset.pattern.permute.xlu0 0
        %552 = vperm.xlu0 %551, %v222
        %v553 = vpop.permute.xlu0 %552
        %555 = vset.pattern.permute.xlu0 0
        %556 = vperm.xlu0 %555, %v223
        %v557 = vpop.permute.xlu0 %556
        %559 = vset.pattern.permute.xlu0 0
        %560 = vperm.xlu0 %559, %v224
        %v561 = vpop.permute.xlu0 %560
        %563 = vset.pattern.permute.xlu0 0
        %564 = vperm.xlu0 %563, %v225
        %v565 = vpop.permute.xlu0 %564
        %567 = vset.pattern.permute.xlu0 0
        %568 = vperm.xlu0 %567, %v226
        %v569 = vpop.permute.xlu0 %568
        %571 = vset.pattern.permute.xlu0 0
        %572 = vperm.xlu0 %571, %v227
        %v573 = vpop.permute.xlu0 %572
        %575 = vset.pattern.permute.xlu0 0
        %576 = vperm.xlu0 %575, %v228
        %v577 = vpop.permute.xlu0 %576
        %579 = vset.pattern.permute.xlu0 0
        %580 = vperm.xlu0 %579, %v229
        %v581 = vpop.permute.xlu0 %580
        %583 = vset.pattern.permute.xlu0 0
        %584 = vperm.xlu0 %583, %v230
        %v585 = vpop.permute.xlu0 %584
        %587 = vset.pattern.permute.xlu0 0
        %588 = vperm.xlu0 %587, %v231
        %v589 = vpop.permute.xlu0 %588
        %591 = vset.pattern.permute.xlu0 0
        %592 = vperm.xlu0 %591, %v232
        %v593 = vpop.permute.xlu0 %592
        %v595 = vmul.f32 %v529, %v510
        %v596 = vmul.f32 %v533, %v511
        %v597 = vmul.f32 %v537, %v512
        %v598 = vmul.f32 %v541, %v513
        %v599 = vmul.f32 %v545, %v514
        %v600 = vmul.f32 %v549, %v515
        %v601 = vmul.f32 %v553, %v516
        %v602 = vmul.f32 %v557, %v517
        %v603 = vmul.f32 %v561, %v518
        %v604 = vmul.f32 %v565, %v519
        %v605 = vmul.f32 %v569, %v520
        %v606 = vmul.f32 %v573, %v521
        %v607 = vmul.f32 %v577, %v522
        %v608 = vmul.f32 %v581, %v523
        %v609 = vmul.f32 %v585, %v524
        %v610 = vmul.f32 %v589, %v525
        %v611 = vmul.f32 %v593, %v526
        %v612 = vadd.f32 %v318, %v595
        %v613 = vadd.f32 %v319, %v596
        %v614 = vadd.f32 %v320, %v597
        %v615 = vadd.f32 %v321, %v598
        %v616 = vadd.f32 %v322, %v599
        %v617 = vadd.f32 %v323, %v600
        %v618 = vadd.f32 %v324, %v601
        %v619 = vadd.f32 %v325, %v602
        %v620 = vadd.f32 %v326, %v603
        %v621 = vadd.f32 %v327, %v604
        %v622 = vadd.f32 %v328, %v605
        %v623 = vadd.f32 %v329, %v606
        %v624 = vadd.f32 %v330, %v607
        %v625 = vadd.f32 %v331, %v608
        %v626 = vadd.f32 %v332, %v609
        %v627 = vadd.f32 %v333, %v610
        %v628 = vadd.f32 %v334, %v611
        %v629 = vadd.s32 %v215, 4294967295
        %vm630 = vcmp.ge.s32.totalorder %v629, 0
        %vm631 = vcmp.lt.s32.totalorder %v629, 16
        %vm632 = vmand %vm630, %vm631
        %633 = vrot.lane.b32.xlu0 %v421, 113
        %v634 = vpop.permute.xlu0 %633
        %635 = vrot.lane.b32.xlu0 %v422, 113
        %v636 = vpop.permute.xlu0 %635
        %637 = vrot.lane.b32.xlu0 %v423, 113
        %v638 = vpop.permute.xlu0 %637
        %639 = vrot.lane.b32.xlu0 %v424, 113
        %v640 = vpop.permute.xlu0 %639
        %641 = vrot.lane.b32.xlu0 %v425, 113
        %v642 = vpop.permute.xlu0 %641
        %643 = vrot.lane.b32.xlu0 %v426, 113
        %v644 = vpop.permute.xlu0 %643
        %645 = vrot.lane.b32.xlu0 %v427, 113
        %v646 = vpop.permute.xlu0 %645
        %647 = vrot.lane.b32.xlu0 %v428, 113
        %v648 = vpop.permute.xlu0 %647
        %649 = vrot.lane.b32.xlu0 %v429, 113
        %v650 = vpop.permute.xlu0 %649
        %651 = vrot.lane.b32.xlu0 %v430, 113
        %v652 = vpop.permute.xlu0 %651
        %653 = vrot.lane.b32.xlu0 %v431, 113
        %v654 = vpop.permute.xlu0 %653
        %655 = vrot.lane.b32.xlu0 %v432, 113
        %v656 = vpop.permute.xlu0 %655
        %657 = vrot.lane.b32.xlu0 %v433, 113
        %v658 = vpop.permute.xlu0 %657
        %659 = vrot.lane.b32.xlu0 %v434, 113
        %v660 = vpop.permute.xlu0 %659
        %661 = vrot.lane.b32.xlu0 %v435, 113
        %v662 = vpop.permute.xlu0 %661
        %663 = vrot.lane.b32.xlu0 %v436, 113
        %v664 = vpop.permute.xlu0 %663
        %665 = vrot.lane.b32.xlu0 %v437, 113
        %v666 = vpop.permute.xlu0 %665
        %v684 = vsel %vm632, %v634, 0.0
        %v685 = vsel %vm632, %v636, 0.0
        %v686 = vsel %vm632, %v638, 0.0
        %v687 = vsel %vm632, %v640, 0.0
        %v688 = vsel %vm632, %v642, 0.0
        %v689 = vsel %vm632, %v644, 0.0
        %v690 = vsel %vm632, %v646, 0.0
        %v691 = vsel %vm632, %v648, 0.0
        %v692 = vsel %vm632, %v650, 0.0
        %v693 = vsel %vm632, %v652, 0.0
        %v694 = vsel %vm632, %v654, 0.0
        %v695 = vsel %vm632, %v656, 0.0
        %v696 = vsel %vm632, %v658, 0.0
        %v697 = vsel %vm632, %v660, 0.0
        %v698 = vsel %vm632, %v662, 0.0
        %v699 = vsel %vm632, %v664, 0.0
        %v700 = vsel %vm632, %v666, 0.0
        %701 = vset.pattern.permute.xlu0 1
        %702 = vperm.xlu0 %701, %v216
        %v703 = vpop.permute.xlu0 %702
        %705 = vset.pattern.permute.xlu0 1
        %706 = vperm.xlu0 %705, %v217
        %v707 = vpop.permute.xlu0 %706
        %709 = vset.pattern.permute.xlu0 1
        %710 = vperm.xlu0 %709, %v218
        %v711 = vpop.permute.xlu0 %710
        %713 = vset.pattern.permute.xlu0 1
        %714 = vperm.xlu0 %713, %v219
        %v715 = vpop.permute.xlu0 %714
        %717 = vset.pattern.permute.xlu0 1
        %718 = vperm.xlu0 %717, %v220
        %v719 = vpop.permute.xlu0 %718
        %721 = vset.pattern.permute.xlu0 1
        %722 = vperm.xlu0 %721, %v221
        %v723 = vpop.permute.xlu0 %722
        %725 = vset.pattern.permute.xlu0 1
        %726 = vperm.xlu0 %725, %v222
        %v727 = vpop.permute.xlu0 %726
        %729 = vset.pattern.permute.xlu0 1
        %730 = vperm.xlu0 %729, %v223
        %v731 = vpop.permute.xlu0 %730
        %733 = vset.pattern.permute.xlu0 1
        %734 = vperm.xlu0 %733, %v224
        %v735 = vpop.permute.xlu0 %734
        %737 = vset.pattern.permute.xlu0 1
        %738 = vperm.xlu0 %737, %v225
        %v739 = vpop.permute.xlu0 %738
        %741 = vset.pattern.permute.xlu0 1
        %742 = vperm.xlu0 %741, %v226
        %v743 = vpop.permute.xlu0 %742
        %745 = vset.pattern.permute.xlu0 1
        %746 = vperm.xlu0 %745, %v227
        %v747 = vpop.permute.xlu0 %746
        %749 = vset.pattern.permute.xlu0 1
        %750 = vperm.xlu0 %749, %v228
        %v751 = vpop.permute.xlu0 %750
        %753 = vset.pattern.permute.xlu0 1
        %754 = vperm.xlu0 %753, %v229
        %v755 = vpop.permute.xlu0 %754
        %757 = vset.pattern.permute.xlu0 1
        %758 = vperm.xlu0 %757, %v230
        %v759 = vpop.permute.xlu0 %758
        %761 = vset.pattern.permute.xlu0 1
        %762 = vperm.xlu0 %761, %v231
        %v763 = vpop.permute.xlu0 %762
        %765 = vset.pattern.permute.xlu0 1
        %766 = vperm.xlu0 %765, %v232
        %v767 = vpop.permute.xlu0 %766
        %v769 = vmul.f32 %v703, %v684
        %v770 = vmul.f32 %v707, %v685
        %v771 = vmul.f32 %v711, %v686
        %v772 = vmul.f32 %v715, %v687
        %v773 = vmul.f32 %v719, %v688
        %v774 = vmul.f32 %v723, %v689
        %v775 = vmul.f32 %v727, %v690
        %v776 = vmul.f32 %v731, %v691
        %v777 = vmul.f32 %v735, %v692
        %v778 = vmul.f32 %v739, %v693
        %v779 = vmul.f32 %v743, %v694
        %v780 = vmul.f32 %v747, %v695
        %v781 = vmul.f32 %v751, %v696
        %v782 = vmul.f32 %v755, %v697
        %v783 = vmul.f32 %v759, %v698
        %v784 = vmul.f32 %v763, %v699
        %v785 = vmul.f32 %v767, %v700
        %v786 = vadd.f32 %v612, %v769
        %v787 = vadd.f32 %v613, %v770
        %v788 = vadd.f32 %v614, %v771
        %v789 = vadd.f32 %v615, %v772
        %v790 = vadd.f32 %v616, %v773
        %v791 = vadd.f32 %v617, %v774
        %v792 = vadd.f32 %v618, %v775
        %v793 = vadd.f32 %v619, %v776
        %v794 = vadd.f32 %v620, %v777
        %v795 = vadd.f32 %v621, %v778
        %v796 = vadd.f32 %v622, %v779
        %v797 = vadd.f32 %v623, %v780
        %v798 = vadd.f32 %v624, %v781
        %v799 = vadd.f32 %v625, %v782
        %v800 = vadd.f32 %v626, %v783
        %v801 = vadd.f32 %v627, %v784
        %v802 = vadd.f32 %v628, %v785
        %v803 = vadd.s32 %v215, 1
        %vm804 = vcmp.ge.s32.totalorder %v803, 0
        %vm805 = vcmp.lt.s32.totalorder %v803, 16
        %vm806 = vmand %vm804, %vm805
        %807 = vrot.lane.b32.xlu0 %v421, 127
        %v808 = vpop.permute.xlu0 %807
        %809 = vrot.lane.b32.xlu0 %v422, 127
        %v810 = vpop.permute.xlu0 %809
        %811 = vrot.lane.b32.xlu0 %v423, 127
        %v812 = vpop.permute.xlu0 %811
        %813 = vrot.lane.b32.xlu0 %v424, 127
        %v814 = vpop.permute.xlu0 %813
        %815 = vrot.lane.b32.xlu0 %v425, 127
        %v816 = vpop.permute.xlu0 %815
        %817 = vrot.lane.b32.xlu0 %v426, 127
        %v818 = vpop.permute.xlu0 %817
        %819 = vrot.lane.b32.xlu0 %v427, 127
        %v820 = vpop.permute.xlu0 %819
        %821 = vrot.lane.b32.xlu0 %v428, 127
        %v822 = vpop.permute.xlu0 %821
        %823 = vrot.lane.b32.xlu0 %v429, 127
        %v824 = vpop.permute.xlu0 %823
        %825 = vrot.lane.b32.xlu0 %v430, 127
        %v826 = vpop.permute.xlu0 %825
        %827 = vrot.lane.b32.xlu0 %v431, 127
        %v828 = vpop.permute.xlu0 %827
        %829 = vrot.lane.b32.xlu0 %v432, 127
        %v830 = vpop.permute.xlu0 %829
        %831 = vrot.lane.b32.xlu0 %v433, 127
        %v832 = vpop.permute.xlu0 %831
        %833 = vrot.lane.b32.xlu0 %v434, 127
        %v834 = vpop.permute.xlu0 %833
        %835 = vrot.lane.b32.xlu0 %v435, 127
        %v836 = vpop.permute.xlu0 %835
        %837 = vrot.lane.b32.xlu0 %v436, 127
        %v838 = vpop.permute.xlu0 %837
        %839 = vrot.lane.b32.xlu0 %v437, 127
        %v840 = vpop.permute.xlu0 %839
        %v858 = vsel %vm806, %v808, 0.0
        %v859 = vsel %vm806, %v810, 0.0
        %v860 = vsel %vm806, %v812, 0.0
        %v861 = vsel %vm806, %v814, 0.0
        %v862 = vsel %vm806, %v816, 0.0
        %v863 = vsel %vm806, %v818, 0.0
        %v864 = vsel %vm806, %v820, 0.0
        %v865 = vsel %vm806, %v822, 0.0
        %v866 = vsel %vm806, %v824, 0.0
        %v867 = vsel %vm806, %v826, 0.0
        %v868 = vsel %vm806, %v828, 0.0
        %v869 = vsel %vm806, %v830, 0.0
        %v870 = vsel %vm806, %v832, 0.0
        %v871 = vsel %vm806, %v834, 0.0
        %v872 = vsel %vm806, %v836, 0.0
        %v873 = vsel %vm806, %v838, 0.0
        %v874 = vsel %vm806, %v840, 0.0
        %875 = vset.pattern.permute.xlu0 3
        %876 = vperm.xlu0 %875, %v216
        %v877 = vpop.permute.xlu0 %876
        %879 = vset.pattern.permute.xlu0 3
        %880 = vperm.xlu0 %879, %v217
        %v881 = vpop.permute.xlu0 %880
        %883 = vset.pattern.permute.xlu0 3
        %884 = vperm.xlu0 %883, %v218
        %v885 = vpop.permute.xlu0 %884
        %887 = vset.pattern.permute.xlu0 3
        %888 = vperm.xlu0 %887, %v219
        %v889 = vpop.permute.xlu0 %888
        %891 = vset.pattern.permute.xlu0 3
        %892 = vperm.xlu0 %891, %v220
        %v893 = vpop.permute.xlu0 %892
        %895 = vset.pattern.permute.xlu0 3
        %896 = vperm.xlu0 %895, %v221
        %v897 = vpop.permute.xlu0 %896
        %899 = vset.pattern.permute.xlu0 3
        %900 = vperm.xlu0 %899, %v222
        %v901 = vpop.permute.xlu0 %900
        %903 = vset.pattern.permute.xlu0 3
        %904 = vperm.xlu0 %903, %v223
        %v905 = vpop.permute.xlu0 %904
        %907 = vset.pattern.permute.xlu0 3
        %908 = vperm.xlu0 %907, %v224
        %v909 = vpop.permute.xlu0 %908
        %911 = vset.pattern.permute.xlu0 3
        %912 = vperm.xlu0 %911, %v225
        %v913 = vpop.permute.xlu0 %912
        %915 = vset.pattern.permute.xlu0 3
        %916 = vperm.xlu0 %915, %v226
        %v917 = vpop.permute.xlu0 %916
        %919 = vset.pattern.permute.xlu0 3
        %920 = vperm.xlu0 %919, %v227
        %v921 = vpop.permute.xlu0 %920
        %923 = vset.pattern.permute.xlu0 3
        %924 = vperm.xlu0 %923, %v228
        %v925 = vpop.permute.xlu0 %924
        %927 = vset.pattern.permute.xlu0 3
        %928 = vperm.xlu0 %927, %v229
        %v929 = vpop.permute.xlu0 %928
        %931 = vset.pattern.permute.xlu0 3
        %932 = vperm.xlu0 %931, %v230
        %v933 = vpop.permute.xlu0 %932
        %935 = vset.pattern.permute.xlu0 3
        %936 = vperm.xlu0 %935, %v231
        %v937 = vpop.permute.xlu0 %936
        %939 = vset.pattern.permute.xlu0 3
        %940 = vperm.xlu0 %939, %v232
        %v941 = vpop.permute.xlu0 %940
        %v943 = vmul.f32 %v877, %v858
        %v944 = vmul.f32 %v881, %v859
        %v945 = vmul.f32 %v885, %v860
        %v946 = vmul.f32 %v889, %v861
        %v947 = vmul.f32 %v893, %v862
        %v948 = vmul.f32 %v897, %v863
        %v949 = vmul.f32 %v901, %v864
        %v950 = vmul.f32 %v905, %v865
        %v951 = vmul.f32 %v909, %v866
        %v952 = vmul.f32 %v913, %v867
        %v953 = vmul.f32 %v917, %v868
        %v954 = vmul.f32 %v921, %v869
        %v955 = vmul.f32 %v925, %v870
        %v956 = vmul.f32 %v929, %v871
        %v957 = vmul.f32 %v933, %v872
        %v958 = vmul.f32 %v937, %v873
        %v959 = vmul.f32 %v941, %v874
        %v960 = vadd.f32 %v786, %v943
        %v961 = vadd.f32 %v787, %v944
        %v962 = vadd.f32 %v788, %v945
        %v963 = vadd.f32 %v789, %v946
        %v964 = vadd.f32 %v790, %v947
        %v965 = vadd.f32 %v791, %v948
        %v966 = vadd.f32 %v792, %v949
        %v967 = vadd.f32 %v793, %v950
        %v968 = vadd.f32 %v794, %v951
        %v969 = vadd.f32 %v795, %v952
        %v970 = vadd.f32 %v796, %v953
        %v971 = vadd.f32 %v797, %v954
        %v972 = vadd.f32 %v798, %v955
        %v973 = vadd.f32 %v799, %v956
        %v974 = vadd.f32 %v800, %v957
        %v975 = vadd.f32 %v801, %v958
        %v976 = vadd.f32 %v802, %v959
        %v977 = vadd.s32 %v215, 2
        %vm978 = vcmp.ge.s32.totalorder %v977, 0
        %vm979 = vcmp.lt.s32.totalorder %v977, 16
        %vm980 = vmand %vm978, %vm979
        %981 = vrot.lane.b32.xlu0 %v421, 126
        %v982 = vpop.permute.xlu0 %981
        %983 = vrot.lane.b32.xlu0 %v422, 126
        %v984 = vpop.permute.xlu0 %983
        %985 = vrot.lane.b32.xlu0 %v423, 126
        %v986 = vpop.permute.xlu0 %985
        %987 = vrot.lane.b32.xlu0 %v424, 126
        %v988 = vpop.permute.xlu0 %987
        %989 = vrot.lane.b32.xlu0 %v425, 126
        %v990 = vpop.permute.xlu0 %989
        %991 = vrot.lane.b32.xlu0 %v426, 126
        %v992 = vpop.permute.xlu0 %991
        %993 = vrot.lane.b32.xlu0 %v427, 126
        %v994 = vpop.permute.xlu0 %993
        %995 = vrot.lane.b32.xlu0 %v428, 126
        %v996 = vpop.permute.xlu0 %995
        %997 = vrot.lane.b32.xlu0 %v429, 126
        %v998 = vpop.permute.xlu0 %997
        %999 = vrot.lane.b32.xlu0 %v430, 126
        %v1000 = vpop.permute.xlu0 %999
        %1001 = vrot.lane.b32.xlu0 %v431, 126
        %v1002 = vpop.permute.xlu0 %1001
        %1003 = vrot.lane.b32.xlu0 %v432, 126
        %v1004 = vpop.permute.xlu0 %1003
        %1005 = vrot.lane.b32.xlu0 %v433, 126
        %v1006 = vpop.permute.xlu0 %1005
        %1007 = vrot.lane.b32.xlu0 %v434, 126
        %v1008 = vpop.permute.xlu0 %1007
        %1009 = vrot.lane.b32.xlu0 %v435, 126
        %v1010 = vpop.permute.xlu0 %1009
        %1011 = vrot.lane.b32.xlu0 %v436, 126
        %v1012 = vpop.permute.xlu0 %1011
        %1013 = vrot.lane.b32.xlu0 %v437, 126
        %v1014 = vpop.permute.xlu0 %1013
        %v1032 = vsel %vm980, %v982, 0.0
        %v1033 = vsel %vm980, %v984, 0.0
        %v1034 = vsel %vm980, %v986, 0.0
        %v1035 = vsel %vm980, %v988, 0.0
        %v1036 = vsel %vm980, %v990, 0.0
        %v1037 = vsel %vm980, %v992, 0.0
        %v1038 = vsel %vm980, %v994, 0.0
        %v1039 = vsel %vm980, %v996, 0.0
        %v1040 = vsel %vm980, %v998, 0.0
        %v1041 = vsel %vm980, %v1000, 0.0
        %v1042 = vsel %vm980, %v1002, 0.0
        %v1043 = vsel %vm980, %v1004, 0.0
        %v1044 = vsel %vm980, %v1006, 0.0
        %v1045 = vsel %vm980, %v1008, 0.0
        %v1046 = vsel %vm980, %v1010, 0.0
        %v1047 = vsel %vm980, %v1012, 0.0
        %v1048 = vsel %vm980, %v1014, 0.0
        %1049 = vset.pattern.permute.xlu0 4
        %1050 = vperm.xlu0 %1049, %v216
        %v1051 = vpop.permute.xlu0 %1050
        %1053 = vset.pattern.permute.xlu0 4
        %1054 = vperm.xlu0 %1053, %v217
        %v1055 = vpop.permute.xlu0 %1054
        %1057 = vset.pattern.permute.xlu0 4
        %1058 = vperm.xlu0 %1057, %v218
        %v1059 = vpop.permute.xlu0 %1058
        %1061 = vset.pattern.permute.xlu0 4
        %1062 = vperm.xlu0 %1061, %v219
        %v1063 = vpop.permute.xlu0 %1062
        %1065 = vset.pattern.permute.xlu0 4
        %1066 = vperm.xlu0 %1065, %v220
        %v1067 = vpop.permute.xlu0 %1066
        %1069 = vset.pattern.permute.xlu0 4
        %1070 = vperm.xlu0 %1069, %v221
        %v1071 = vpop.permute.xlu0 %1070
        %1073 = vset.pattern.permute.xlu0 4
        %1074 = vperm.xlu0 %1073, %v222
        %v1075 = vpop.permute.xlu0 %1074
        %1077 = vset.pattern.permute.xlu0 4
        %1078 = vperm.xlu0 %1077, %v223
        %v1079 = vpop.permute.xlu0 %1078
        %1081 = vset.pattern.permute.xlu0 4
        %1082 = vperm.xlu0 %1081, %v224
        %v1083 = vpop.permute.xlu0 %1082
        %1085 = vset.pattern.permute.xlu0 4
        %1086 = vperm.xlu0 %1085, %v225
        %v1087 = vpop.permute.xlu0 %1086
        %1089 = vset.pattern.permute.xlu0 4
        %1090 = vperm.xlu0 %1089, %v226
        %v1091 = vpop.permute.xlu0 %1090
        %1093 = vset.pattern.permute.xlu0 4
        %1094 = vperm.xlu0 %1093, %v227
        %v1095 = vpop.permute.xlu0 %1094
        %1097 = vset.pattern.permute.xlu0 4
        %1098 = vperm.xlu0 %1097, %v228
        %v1099 = vpop.permute.xlu0 %1098
        %1101 = vset.pattern.permute.xlu0 4
        %1102 = vperm.xlu0 %1101, %v229
        %v1103 = vpop.permute.xlu0 %1102
        %1105 = vset.pattern.permute.xlu0 4
        %1106 = vperm.xlu0 %1105, %v230
        %v1107 = vpop.permute.xlu0 %1106
        %1109 = vset.pattern.permute.xlu0 4
        %1110 = vperm.xlu0 %1109, %v231
        %v1111 = vpop.permute.xlu0 %1110
        %1113 = vset.pattern.permute.xlu0 4
        %1114 = vperm.xlu0 %1113, %v232
        %v1115 = vpop.permute.xlu0 %1114
        %v1117 = vmul.f32 %v1051, %v1032
        %v1118 = vmul.f32 %v1055, %v1033
        %v1119 = vmul.f32 %v1059, %v1034
        %v1120 = vmul.f32 %v1063, %v1035
        %v1121 = vmul.f32 %v1067, %v1036
        %v1122 = vmul.f32 %v1071, %v1037
        %v1123 = vmul.f32 %v1075, %v1038
        %v1124 = vmul.f32 %v1079, %v1039
        %v1125 = vmul.f32 %v1083, %v1040
        %v1126 = vmul.f32 %v1087, %v1041
        %v1127 = vmul.f32 %v1091, %v1042
        %v1128 = vmul.f32 %v1095, %v1043
        %v1129 = vmul.f32 %v1099, %v1044
        %v1130 = vmul.f32 %v1103, %v1045
        %v1131 = vmul.f32 %v1107, %v1046
        %v1132 = vmul.f32 %v1111, %v1047
        %v1133 = vmul.f32 %v1115, %v1048
        %v1134 = vadd.f32 %v960, %v1117
        %v1135 = vadd.f32 %v961, %v1118
        %v1136 = vadd.f32 %v962, %v1119
        %v1137 = vadd.f32 %v963, %v1120
        %v1138 = vadd.f32 %v964, %v1121
        %v1139 = vadd.f32 %v965, %v1122
        %v1140 = vadd.f32 %v966, %v1123
        %v1141 = vadd.f32 %v967, %v1124
        %v1142 = vadd.f32 %v968, %v1125
        %v1143 = vadd.f32 %v969, %v1126
        %v1144 = vadd.f32 %v970, %v1127
        %v1145 = vadd.f32 %v971, %v1128
        %v1146 = vadd.f32 %v972, %v1129
        %v1147 = vadd.f32 %v973, %v1130
        %v1148 = vadd.f32 %v974, %v1131
        %v1149 = vadd.f32 %v975, %v1132
        %v1150 = vadd.f32 %v976, %v1133
        %1151 = vset.pattern.permute.xlu0 5
        %1152 = vperm.xlu0 %1151, %v216
        %v1153 = vpop.permute.xlu0 %1152
        %1155 = vset.pattern.permute.xlu0 5
        %1156 = vperm.xlu0 %1155, %v217
        %v1157 = vpop.permute.xlu0 %1156
        %1159 = vset.pattern.permute.xlu0 5
        %1160 = vperm.xlu0 %1159, %v218
        %v1161 = vpop.permute.xlu0 %1160
        %1163 = vset.pattern.permute.xlu0 5
        %1164 = vperm.xlu0 %1163, %v219
        %v1165 = vpop.permute.xlu0 %1164
        %1167 = vset.pattern.permute.xlu0 5
        %1168 = vperm.xlu0 %1167, %v220
        %v1169 = vpop.permute.xlu0 %1168
        %1171 = vset.pattern.permute.xlu0 5
        %1172 = vperm.xlu0 %1171, %v221
        %v1173 = vpop.permute.xlu0 %1172
        %1175 = vset.pattern.permute.xlu0 5
        %1176 = vperm.xlu0 %1175, %v222
        %v1177 = vpop.permute.xlu0 %1176
        %1179 = vset.pattern.permute.xlu0 5
        %1180 = vperm.xlu0 %1179, %v223
        %v1181 = vpop.permute.xlu0 %1180
        %1183 = vset.pattern.permute.xlu0 5
        %1184 = vperm.xlu0 %1183, %v224
        %v1185 = vpop.permute.xlu0 %1184
        %1187 = vset.pattern.permute.xlu0 5
        %1188 = vperm.xlu0 %1187, %v225
        %v1189 = vpop.permute.xlu0 %1188
        %1191 = vset.pattern.permute.xlu0 5
        %1192 = vperm.xlu0 %1191, %v226
        %v1193 = vpop.permute.xlu0 %1192
        %1195 = vset.pattern.permute.xlu0 5
        %1196 = vperm.xlu0 %1195, %v227
        %v1197 = vpop.permute.xlu0 %1196
        %1199 = vset.pattern.permute.xlu0 5
        %1200 = vperm.xlu0 %1199, %v228
        %v1201 = vpop.permute.xlu0 %1200
        %1203 = vset.pattern.permute.xlu0 5
        %1204 = vperm.xlu0 %1203, %v229
        %v1205 = vpop.permute.xlu0 %1204
        %1207 = vset.pattern.permute.xlu0 5
        %1208 = vperm.xlu0 %1207, %v230
        %v1209 = vpop.permute.xlu0 %1208
        %1211 = vset.pattern.permute.xlu0 5
        %1212 = vperm.xlu0 %1211, %v231
        %v1213 = vpop.permute.xlu0 %1212
        %1215 = vset.pattern.permute.xlu0 5
        %1216 = vperm.xlu0 %1215, %v232
        %v1217 = vpop.permute.xlu0 %1216
        %v1219 = vadd.f32 %v1134, %v1153
        %v1220 = vadd.f32 %v1135, %v1157
        %v1221 = vadd.f32 %v1136, %v1161
        %v1222 = vadd.f32 %v1137, %v1165
        %v1223 = vadd.f32 %v1138, %v1169
        %v1224 = vadd.f32 %v1139, %v1173
        %v1225 = vadd.f32 %v1140, %v1177
        %v1226 = vadd.f32 %v1141, %v1181
        %v1227 = vadd.f32 %v1142, %v1185
        %v1228 = vadd.f32 %v1143, %v1189
        %v1229 = vadd.f32 %v1144, %v1193
        %v1230 = vadd.f32 %v1145, %v1197
        %v1231 = vadd.f32 %v1146, %v1201
        %v1232 = vadd.f32 %v1147, %v1205
        %v1233 = vadd.f32 %v1148, %v1209
        %v1234 = vadd.f32 %v1149, %v1213
        %v1235 = vadd.f32 %v1150, %v1217
        %v1236 = vmax.f32 %v1219, 0.0
        %v1237 = vmax.f32 %v1220, 0.0
        %v1238 = vmax.f32 %v1221, 0.0
        %v1239 = vmax.f32 %v1222, 0.0
        %v1240 = vmax.f32 %v1223, 0.0
        %v1241 = vmax.f32 %v1224, 0.0
        %v1242 = vmax.f32 %v1225, 0.0
        %v1243 = vmax.f32 %v1226, 0.0
        %v1244 = vmax.f32 %v1227, 0.0
        %v1245 = vmax.f32 %v1228, 0.0
        %v1246 = vmax.f32 %v1229, 0.0
        %v1247 = vmax.f32 %v1230, 0.0
        %v1248 = vmax.f32 %v1231, 0.0
        %v1249 = vmax.f32 %v1232, 0.0
        %v1250 = vmax.f32 %v1233, 0.0
        %v1251 = vmax.f32 %v1234, 0.0
        %v1252 = vmax.f32 %v1235, 0.0
        %vm1253 = vcmask 130048
        %1254 = vst.msk [vmem:[#allocation2 + $0x80] sm:$0xff] %vm1253, 0.0
        %1255 = vst.msk [vmem:[#allocation2 + $0x108] sm:$0xff] %vm1253, 0.0
        %1256 = vst.msk [vmem:[#allocation2] sm:$0xff] %vm1253, %v1236
        %1257 = vst.msk [vmem:[#allocation2 + $0x8] sm:$0xff] %vm1253, %v1237
        %1258 = vst.msk [vmem:[#allocation2 + $0x10] sm:$0xff] %vm1253, %v1238
        %1259 = vst.msk [vmem:[#allocation2 + $0x18] sm:$0xff] %vm1253, %v1239
        %1260 = vst.msk [vmem:[#allocation2 + $0x20] sm:$0xff] %vm1253, %v1240
        %1261 = vst.msk [vmem:[#allocation2 + $0x28] sm:$0xff] %vm1253, %v1241
        %1262 = vst.msk [vmem:[#allocation2 + $0x30] sm:$0xff] %vm1253, %v1242
        %1263 = vst.msk [vmem:[#allocation2 + $0x38] sm:$0xff] %vm1253, %v1243
        %1264 = vst.msk [vmem:[#allocation2 + $0x40] sm:$0xff] %vm1253, %v1244
        %1265 = vst.msk [vmem:[#allocation2 + $0x48] sm:$0xff] %vm1253, %v1245
        %1266 = vst.msk [vmem:[#allocation2 + $0x50] sm:$0xff] %vm1253, %v1246
        %1267 = vst.msk [vmem:[#allocation2 + $0x58] sm:$0xff] %vm1253, %v1247
        %1268 = vst.msk [vmem:[#allocation2 + $0x60] sm:$0xff] %vm1253, %v1248
        %1269 = vst.msk [vmem:[#allocation2 + $0x68] sm:$0xff] %vm1253, %v1249
        %1270 = vst.msk [vmem:[#allocation2 + $0x70] sm:$0xff] %vm1253, %v1250
        %1271 = vst.msk [vmem:[#allocation2 + $0x78] sm:$0xff] %vm1253, %v1251
        %vm1272 = vcmask 122880
        %1273 = vst.msk [vmem:[#allocation2 + $0x80] sm:$0x1] %vm1272, %v1252
        %1274 = vst.msk [vmem:[#allocation2 + $0x88] sm:$0xff] %vm1253, %v197
        %1275 = vst.msk [vmem:[#allocation2 + $0x90] sm:$0xff] %vm1253, %v198
        %1276 = vst.msk [vmem:[#allocation2 + $0x98] sm:$0xff] %vm1253, %v199
        %1277 = vst.msk [vmem:[#allocation2 + $0xa0] sm:$0xff] %vm1253, %v200
        %1278 = vst.msk [vmem:[#allocation2 + $0xa8] sm:$0xff] %vm1253, %v201
        %1279 = vst.msk [vmem:[#allocation2 + $0xb0] sm:$0xff] %vm1253, %v202
        %1280 = vst.msk [vmem:[#allocation2 + $0xb8] sm:$0xff] %vm1253, %v203
        %1281 = vst.msk [vmem:[#allocation2 + $0xc0] sm:$0xff] %vm1253, %v204
        %1282 = vst.msk [vmem:[#allocation2 + $0xc8] sm:$0xff] %vm1253, %v205
        %1283 = vst.msk [vmem:[#allocation2 + $0xd0] sm:$0xff] %vm1253, %v206
        %1284 = vst.msk [vmem:[#allocation2 + $0xd8] sm:$0xff] %vm1253, %v207
        %1285 = vst.msk [vmem:[#allocation2 + $0xe0] sm:$0xff] %vm1253, %v208
        %1286 = vst.msk [vmem:[#allocation2 + $0xe8] sm:$0xff] %vm1253, %v209
        %1287 = vst.msk [vmem:[#allocation2 + $0xf0] sm:$0xff] %vm1253, %v210
        %1288 = vst.msk [vmem:[#allocation2 + $0xf8] sm:$0xff] %vm1253, %v211
        %1289 = vst.msk [vmem:[#allocation2 + $0x100] sm:$0xff] %vm1253, %v212
        %1290 = vst.msk [vmem:[#allocation2 + $0x108] sm:$0x1] %vm1272, %v213
        %v1291 = vld [vmem:[#allocation2] sm:$0xff]
        %v1292 = vld [vmem:[#allocation2 + $0x8] sm:$0xff]
        %v1293 = vld [vmem:[#allocation2 + $0x10] sm:$0xff]
        %v1294 = vld [vmem:[#allocation2 + $0x18] sm:$0xff]
        %v1295 = vld [vmem:[#allocation2 + $0x20] sm:$0xff]
        %v1296 = vld [vmem:[#allocation2 + $0x28] sm:$0xff]
        %v1297 = vld [vmem:[#allocation2 + $0x30] sm:$0xff]
        %v1298 = vld [vmem:[#allocation2 + $0x38] sm:$0xff]
        %v1299 = vld [vmem:[#allocation2 + $0x40] sm:$0xff]
        %v1300 = vld [vmem:[#allocation2 + $0x48] sm:$0xff]
        %v1301 = vld [vmem:[#allocation2 + $0x50] sm:$0xff]
        %v1302 = vld [vmem:[#allocation2 + $0x58] sm:$0xff]
        %v1303 = vld [vmem:[#allocation2 + $0x60] sm:$0xff]
        %v1304 = vld [vmem:[#allocation2 + $0x68] sm:$0xff]
        %v1305 = vld [vmem:[#allocation2 + $0x70] sm:$0xff]
        %v1306 = vld [vmem:[#allocation2 + $0x78] sm:$0xff]
        %v1307 = vld [vmem:[#allocation2 + $0x80] sm:$0xff]
        %v1308 = vld [vmem:[#allocation2 + $0x88] sm:$0xff]
        %v1309 = vld [vmem:[#allocation2 + $0x90] sm:$0xff]
        %v1310 = vld [vmem:[#allocation2 + $0x98] sm:$0xff]
        %v1311 = vld [vmem:[#allocation2 + $0xa0] sm:$0xff]
        %v1312 = vld [vmem:[#allocation2 + $0xa8] sm:$0xff]
        %v1313 = vld [vmem:[#allocation2 + $0xb0] sm:$0xff]
        %v1314 = vld [vmem:[#allocation2 + $0xb8] sm:$0xff]
        %v1315 = vld [vmem:[#allocation2 + $0xc0] sm:$0xff]
        %v1316 = vld [vmem:[#allocation2 + $0xc8] sm:$0xff]
        %v1317 = vld [vmem:[#allocation2 + $0xd0] sm:$0xff]
        %v1318 = vld [vmem:[#allocation2 + $0xd8] sm:$0xff]
        %v1319 = vld [vmem:[#allocation2 + $0xe0] sm:$0xff]
        %v1320 = vld [vmem:[#allocation2 + $0xe8] sm:$0xff]
        %v1321 = vld [vmem:[#allocation2 + $0xf0] sm:$0xff]
        %v1322 = vld [vmem:[#allocation2 + $0xf8] sm:$0xff]
        %v1323 = vld [vmem:[#allocation2 + $0x100] sm:$0xff]
        %v1324 = vld [vmem:[#allocation2 + $0x108] sm:$0xff]
        %v1325 = vpack.c.bf16 %v1292, %v1291
        %v1326 = vpack.c.bf16 %v1294, %v1293
        %v1327 = vpack.c.bf16 %v1296, %v1295
        %v1328 = vpack.c.bf16 %v1298, %v1297
        %v1329 = vpack.c.bf16 %v1300, %v1299
        %v1330 = vpack.c.bf16 %v1302, %v1301
        %v1331 = vpack.c.bf16 %v1304, %v1303
        %v1332 = vpack.c.bf16 %v1306, %v1305
        %v1333 = vpack.c.bf16 %v1308, %v1307
        %v1334 = vpack.c.bf16 %v1310, %v1309
        %v1335 = vpack.c.bf16 %v1312, %v1311
        %v1336 = vpack.c.bf16 %v1314, %v1313
        %v1337 = vpack.c.bf16 %v1316, %v1315
        %v1338 = vpack.c.bf16 %v1318, %v1317
        %v1339 = vpack.c.bf16 %v1320, %v1319
        %v1340 = vpack.c.bf16 %v1322, %v1321
        %v1341 = vpack.c.bf16 %v1324, %v1323
        %v1342 = vld [vmem:[%s2] sm:$0xff]
        %v1343 = vld [vmem:[%s2 + $0x8] sm:$0xf]
        %v1344 = vld [vmem:[%s2 + $0xc] sm:$0xff]
        %v1345 = vld [vmem:[%s2 + $0x14] sm:$0xf]
        %v1346 = vld [vmem:[%s3] sm:$0xff]
        %v1347 = vld [vmem:[%s3 + $0x8] sm:$0xff]
        %1349 = vset.pattern.permute.xlu0 0
        %1350 = vperm.xlu0 %1349, %v1346
        %v1351 = vpop.permute.xlu0 %1350
        %1354 = vset.pattern.permute.xlu0 0
        %1355 = vperm.xlu0 %1354, %v1347
        %v1356 = vpop.permute.xlu0 %1355
        %v1362 = vunpack.c.l.b16 %v1342
        %v1363 = vunpack.c.h.b16 %v1342
        %v1364 = vunpack.c.l.b16 %v1343
        %v1365 = vunpack.c.l.b16 %v1344
        %v1366 = vunpack.c.h.b16 %v1344
        %v1367 = vunpack.c.l.b16 %v1345
        %v1368 = vpack.c.b16 %v1365, %v1362
        %v1369 = vpack.c.b16 %v1366, %v1363
        %v1370 = vpack.c.b16 %v1367, %v1364
        %v1374 = vsel %vm1253, %v1370, 0
        %1376 = vmatprep.subr.bf16.mxu0 0
        %1377 = vmatpush1.bf16.msra.mxu0 %v1325
        %1378 = vmatprep.subr.bf16.mxu0 0
        %1379 = vmatpush1.bf16.msra.mxu0 %v1326
        %1380 = vmatprep.subr.bf16.mxu0 0
        %1381 = vmatpush1.bf16.msra.mxu0 %v1327
        %1382 = vmatprep.subr.bf16.mxu0 0
        %1383 = vmatpush1.bf16.msra.mxu0 %v1328
        %1384 = vmatprep.subr.bf16.mxu0 0
        %1385 = vmatpush1.bf16.msra.mxu0 %v1329
        %1386 = vmatprep.subr.bf16.mxu0 0
        %1387 = vmatpush1.bf16.msra.mxu0 %v1330
        %1388 = vmatprep.subr.bf16.mxu0 0
        %1389 = vmatpush1.bf16.msra.mxu0 %v1331
        %1390 = vmatprep.subr.bf16.mxu0 0
        %1391 = vmatpush1.bf16.msra.mxu0 %v1332
        %1392 = vmatprep.subr.bf16.mxu0 0
        %1393 = vmatpush1.bf16.msra.mxu0 %v1333
        %1394 = vmatprep.subr.bf16.mxu0 0
        %1395 = vmatpush1.bf16.msra.mxu0 %v1334
        %1396 = vmatprep.subr.bf16.mxu0 0
        %1397 = vmatpush1.bf16.msra.mxu0 %v1335
        %1398 = vmatprep.subr.bf16.mxu0 0
        %1399 = vmatpush1.bf16.msra.mxu0 %v1336
        %1400 = vmatprep.subr.bf16.mxu0 0
        %1401 = vmatpush1.bf16.msra.mxu0 %v1337
        %1402 = vmatprep.subr.bf16.mxu0 0
        %1403 = vmatpush1.bf16.msra.mxu0 %v1338
        %1404 = vmatprep.subr.bf16.mxu0 0
        %1405 = vmatpush1.bf16.msra.mxu0 %v1339
        %1406 = vmatprep.subr.bf16.mxu0 0
        %1407 = vmatpush1.bf16.msra.mxu0 %v1340
        %1408 = vmatprep.mubr.bf16.mxu0 %v1369
        %1409 = vmatmul.mubr.bf16.gmra.mrb[0].mxu0 %v1368
        %v1410 = vpop.f32.mrb[0].mxu0
        %v1411 = vadd.f32 %v1351, %v1410
        %v1412 = vpop.f32.mrb[0].mxu0
        %v1413 = vpop.f32.mrb[0].mxu0
        %v1414 = vadd.f32 %v1356, %v1413
        %v1415 = vpop.f32.mrb[0].mxu0
        %1416 = vdwg.mxu0
        %1417 = vmatprep.subr.bf16.mxu0 0
        %1418 = vmatpush1.bf16.msra.mxu0 %v1341
        %1419 = vmatprep.subr.bf16.mxu0 0
        %1420 = vmatpush1.bf16.msra.mxu0 0
        %1421 = vmatprep.subr.bf16.mxu0 0
        %1422 = vmatpush1.bf16.msra.mxu0 0
        %1423 = vmatprep.subr.bf16.mxu0 0
        %1424 = vmatpush1.bf16.msra.mxu0 0
        %1425 = vmatprep.subr.bf16.mxu0 0
        %1426 = vmatpush1.bf16.msra.mxu0 0
        %1427 = vmatprep.subr.bf16.mxu0 0
        %1428 = vmatpush1.bf16.msra.mxu0 0
        %1429 = vmatprep.subr.bf16.mxu0 0
        %1430 = vmatpush1.bf16.msra.mxu0 0
        %1431 = vmatprep.subr.bf16.mxu0 0
        %1432 = vmatpush1.bf16.msra.mxu0 0
        %1433 = vmatprep.subr.bf16.mxu0 0
        %1434 = vmatpush1.bf16.msra.mxu0 0
        %1435 = vmatprep.subr.bf16.mxu0 0
        %1436 = vmatpush1.bf16.msra.mxu0 0
        %1437 = vmatprep.subr.bf16.mxu0 0
        %1438 = vmatpush1.bf16.msra.mxu0 0
        %1439 = vmatprep.subr.bf16.mxu0 0
        %1440 = vmatpush1.bf16.msra.mxu0 0
        %1441 = vmatprep.subr.bf16.mxu0 0
        %1442 = vmatpush1.bf16.msra.mxu0 0
        %1443 = vmatprep.subr.bf16.mxu0 0
        %1444 = vmatpush1.bf16.msra.mxu0 0
        %1445 = vmatprep.subr.bf16.mxu0 0
        %1446 = vmatpush1.bf16.msra.mxu0 0
        %1447 = vmatprep.subr.bf16.mxu0 0
        %1448 = vmatpush1.bf16.msra.mxu0 0
        %1449 = vmatprep.mubr.bf16.mxu0 0
        %1450 = vmatmul.mubr.bf16.gmra.mrb[0].mxu0 %v1374
        %v1451 = vpop.f32.mrb[0].mxu0
        %v1452 = vadd.f32 %v1411, %v1451
        %v1453 = vpop.f32.mrb[0].mxu0
        %v1454 = vpop.f32.mrb[0].mxu0
        %v1455 = vadd.f32 %v1414, %v1454
        %v1456 = vpop.f32.mrb[0].mxu0
        %1457 = vdwg.mxu0
        %v1458 = vmax.f32 %v1452, 0.0
        %v1459 = vmax.f32 %v1455, 0.0
        %1460 = vst.msk [vmem:[%s190] sm:$0xff] %vm1253, %v1458
        %1461 = vst.msk [vmem:[%s190 + $0x8] sm:$0xff] %vm1253, %v1459
        %s1462 = sand.u32 %s115, 1
        %s1463 = scalar_lea.sflag [#allocation4], %s1462
        %s1464 = sand.u32 %s115, 1
        %s1465 = smul.addr %s1464, 16
        %s1466 = scalar_lea.vmem [#allocation3], %s1465
        // Predicated region
        $region37: #{tpu_custom_call.1} parent=35 // pred_check
          %p1467 = pneg %p125
        $region38: #{tpu_custom_call.1} parent=35 // pred_check_branch
          %1469 = sbr.rel (%p1467) target = $region40
        $region39: #{tpu_custom_call.1} parent=35 // pred_region
          %s1471 = ssub.s32 256, 256
          %1472 = vsyncadd %s1463, %s1471
          %s1473 = smul.addr %s18, 2
          %s1474 = smul.addr %s1473, 128
          %s1475 = scalar_lea.hbm %s4, %s1474
          %s1476 = sshll.u32 %s1466, 4
          %s1477 = int_to_ptr.vmem [resolvable:$true] %s1476
          %1482 = dma.vmem_to_hbm [thread:$0]  %s1477, 256, %s1475, %s1463, 128, 128, 8
        $region40: #{tpu_custom_call.1} parent=35 // pred_fallthru
          _
      $region36: #{tpu_custom_call.1} parent=5 // pred_fallthru
        _
      %p1483 = scmp.le.s32.totalorder 2, %s13
      // Predicated region
      $region41: #{tpu_custom_call.1} parent=5 // pred_check
        %p1484 = pneg %p1483
      $region42: #{tpu_custom_call.1} parent=5 // pred_check_branch
        %1486 = sbr.rel (%p1484) target = $region44
      $region43: #{tpu_custom_call.1} parent=5 // pred_region
        %s1487 = ssub.s32 %s13, 2
        // Predicated region
        $region45: #{tpu_custom_call.1} parent=43 // pred_check
          %p1488 = pneg %p131
        $region46: #{tpu_custom_call.1} parent=43 // pred_check_branch
          %1490 = sbr.rel (%p1488) target = $region48
        $region47: #{tpu_custom_call.1} parent=43 // pred_region
          %s1491 = sand.u32 %s116, 1
          %s1492 = scalar_lea.sflag [#allocation4], %s1491
          %s1493 = sand.u32 %s116, 1
          %s1494 = smul.addr %s1493, 16
          %s1495 = scalar_lea.vmem [#allocation3], %s1494
          %1496 = dma.done %s1492, 256
        $region48: #{tpu_custom_call.1} parent=43 // pred_fallthru
          _
      $region44: #{tpu_custom_call.1} parent=5 // pred_fallthru
        _
    $region6: #{tpu_custom_call.1} parent=1 // loop_footer
      %s17 = sadd.s32 1, %s13
    $region7: #{tpu_custom_call.1} parent=1 // loop_footer_branch
      %12 = sbr.rel target = $region3
    $region8: #{tpu_custom_call.1} parent=1 // loop_exit
      _
    %1497 = vsyncpa [#allocation4], 1
    %s1498 = scalar_lea.sflag [#allocation4], 1
    %1499 = vsyncpa %s1498, 1

</llo_original>
